<compile_context>
chip_gen: v6e
topology: v6e:2x2x1
jax: 0.10.0
libtpu: 0.0.40
codegen_flags: <defaults>
</compile_context>

<pallas_src>
import math
from functools import partial

import jax
import jax.numpy as jnp
from jax import lax
from jax.experimental import pallas as pl
from jax.experimental.pallas import tpu as pltpu


def _qkv_proj_kernel(x_ref, w_ref, b_ref, q_ref, kv_ref):
    """Fused Q|K|V projection for one (batch, row-tile) grid step.

    x_ref : (1, TT, C)  input rows (cast to the MXU compute dtype in-kernel)
    w_ref : (C, 3C)     [Wq * 1/sqrt(hd) | Wk | Wv]   (compute dtype)
    b_ref : (1, 3C)     [bq * 1/sqrt(hd) | bk | bv]   (f32)
    q_ref : (1, TT, C)  pre-scaled Q rows             (compute dtype)
    kv_ref: (1, TT, 2C) K|V rows                      (compute dtype)
    """
    C = q_ref.shape[-1]
    x = x_ref[0].astype(w_ref.dtype)
    acc = jnp.dot(x, w_ref[...], preferred_element_type=jnp.float32) + b_ref[0]
    q_ref[0] = acc[:, :C].astype(q_ref.dtype)
    kv_ref[0] = acc[:, C:].astype(kv_ref.dtype)


def _flash_attn_kernel(qi_tab, ki_tab, q_ref, kv_ref, wp_ref, bp_ref, o_ref,
                       m_sc, l_sc, acc_sc, *, n_head):
    """Grid = (B, n_steps) where the second axis walks a lower-triangular
    (qi, ki) table (scalar prefetch), K innermost per Q tile.

    q_ref : (1, TQ, C)   projected, pre-scaled Q rows (compute dtype)
    kv_ref: (1, TK, 2C)  projected K|V rows           (compute dtype)
    wp_ref: (C, C)  bp_ref: (1, C)                    output projection
    o_ref : (1, TQ, C)
    scratch: m_sc / l_sc (H, TQ, 1) f32, acc_sc (TQ, C) f32
    """
    step = pl.program_id(1)
    qi = qi_tab[step]
    ki = ki_tab[step]

    tq = q_ref.shape[1]
    tk = kv_ref.shape[1]
    C = q_ref.shape[2]
    hd = C // n_head

    # ---- first K tile of this Q tile: reset online-softmax state -----------
    @pl.when(ki == 0)
    def _init():
        m_sc[...] = jnp.full(m_sc.shape, -jnp.inf, dtype=jnp.float32)
        l_sc[...] = jnp.zeros(l_sc.shape, dtype=jnp.float32)
        acc_sc[...] = jnp.zeros(acc_sc.shape, dtype=jnp.float32)

    # Causal mask.  The triangular grid guarantees ki <= qi, so only the
    # diagonal tile (ki == qi) has masked entries; on interior tiles this is
    # all-False and the per-head select is cheap VPU filler under the MXU work.
    rows = qi * tq + lax.broadcasted_iota(jnp.int32, (tq, tk), 0)
    cols = ki * tk + lax.broadcasted_iota(jnp.int32, (tq, tk), 1)
    masked = cols > rows

    q = q_ref[0]      # (TQ, C)   already scaled by 1/sqrt(hd)
    kv = kv_ref[0]    # (TK, 2C)

    # TODO(synk): switch to lax.fori_loop(..., unroll=True) with pl.ds head
    # slices for large n_head to bound vreg live ranges.
    for h in range(n_head):                      # static unroll; hd == 128
        sl = slice(h * hd, (h + 1) * hd)         # lane-tile aligned slices
        q_h = q[:, sl]                           # (TQ, hd) compute dtype
        k_h = kv[:, sl]                          # (TK, hd)
        v_h = kv[:, C + h * hd:C + (h + 1) * hd]  # (TK, hd)

        # s = q_h @ k_h.T   (bf16 operands, f32 accumulation)
        s = lax.dot_general(q_h, k_h, (((1,), (1,)), ((), ())),
                            preferred_element_type=jnp.float32)
        s = jnp.where(masked, jnp.float32(-1e10), s)

        # Online (flash) softmax update — all state kept in f32.
        m_prev = m_sc[h]                                        # (TQ, 1)
        m_new = jnp.maximum(m_prev, jnp.max(s, axis=-1, keepdims=True))
        alpha = jnp.exp(m_prev - m_new)
        p = jnp.exp(s - m_new)                                  # f32 probs

        l_sc[h] = alpha * l_sc[h] + jnp.sum(p, axis=-1, keepdims=True)
        acc_sc[:, sl] = alpha * acc_sc[:, sl] + jnp.dot(
            p.astype(v_h.dtype), v_h, preferred_element_type=jnp.float32)
        m_sc[h] = m_new

    # ---- diagonal tile == last needed K tile: normalize, project, write ----
    @pl.when(ki == qi)
    def _finalize():
        inv_l = pl.reciprocal(l_sc[...], approx=False)   # exact (parity w/ ref)
        for h in range(n_head):
            sl = slice(h * hd, (h + 1) * hd)
            acc_sc[:, sl] = acc_sc[:, sl] * inv_l[h]
        y = acc_sc[...].astype(wp_ref.dtype)             # bf16 operand for MXU
        out = jnp.dot(y, wp_ref[...],
                      preferred_element_type=jnp.float32) + bp_ref[0]
        o_ref[0] = out.astype(o_ref.dtype)


def _mosaic_params(semantics, est_vmem_bytes):
    # Explicit VMEM budget (review feedback): scoped defaults are 16 MiB on
    # v5e and 32 MiB on v7x; clamp the request to v7x's 64 MiB physical.
    limit = int(min(max(est_vmem_bytes + (4 << 20), 16 << 20), 64 << 20))
    return pltpu.CompilerParams(dimension_semantics=semantics,
                                vmem_limit_bytes=limit)


def synthesizer_attention(x, params, n_head, *, block_q=256, block_k=256,
                          block_proj=256, compute_dtype=jnp.bfloat16):
    """Forward pass of SynthesizerAttention.forward() (eval mode, no dropout).

    x: (B, T, C).  params: (in, out)-layout weights wq/wk/wv/wp, (C,) biases.
    Use block_q = block_k = 128 on v5e (matches its 128x128 MXU); 256 on
    v6e / v7x.  compute_dtype=bf16 is the production default; f32 available
    for tight-parity checks.
    """
    B, T, C = x.shape
    assert C % n_head == 0, "n_embd must be divisible by n_head"
    hd = C // n_head
    assert hd % 128 == 0, "lane-dense fast path needs head_dim % 128 == 0"
    # TODO(synk): head_dim < 128 needs a (H, T, hd) batched-dot layout to stay
    # lane-tile aligned; not implemented.

    tq = tk = min(block_q, block_k, T)   # square tiles: diag tile == last K tile
    tt = min(block_proj, T)
    assert T % tq == 0 and T % tt == 0, "T must divide the tile sizes"
    # TODO(synk): ragged T (tails not divisible by the tile size) not handled.

    cd = jnp.dtype(compute_dtype)
    xd = jnp.dtype(x.dtype)
    scale = 1.0 / math.sqrt(hd)

    # Fold 1/sqrt(hd) into the Q projection; fuse Q|K|V weights so pass 1 is a
    # single (C, 3C) MXU matmul per row tile.  Matmul operands go to
    # compute_dtype (bf16: all MXU generations are bf16-native); biases f32.
    wqkv = jnp.concatenate(
        [params["wq"] * scale, params["wk"], params["wv"]], axis=1).astype(cd)
    bqkv = jnp.concatenate(
        [params["bq"] * scale, params["bk"], params["bv"]]
    ).reshape(1, 3 * C).astype(jnp.float32)
    wp = params["wp"].astype(cd)
    bp = params["bp"].reshape(1, C).astype(jnp.float32)

    # ---------------- pass 1: fused QKV projection --------------------------
    # Hoisted out of the attention kernel so K/V are projected exactly once
    # (previously recomputed for every Q tile under flash tiling).
    n_t = T // tt
    proj_vmem = (2 * tt * C * xd.itemsize          # x tiles (double buffered)
                 + 2 * 3 * C * C * cd.itemsize     # Wqkv
                 + 2 * 3 * C * 4                   # bias
                 + 2 * tt * C * cd.itemsize        # q out
                 + 2 * tt * 2 * C * cd.itemsize    # kv out
                 + tt * 3 * C * 4)                 # f32 accumulator temporaries
    q, kv = pl.pallas_call(
        _qkv_proj_kernel,
        out_shape=(jax.ShapeDtypeStruct((B, T, C), cd),
                   jax.ShapeDtypeStruct((B, T, 2 * C), cd)),
        grid_spec=pltpu.PrefetchScalarGridSpec(
            num_scalar_prefetch=0,
            grid=(B, n_t),
            in_specs=[
                pl.BlockSpec((1, tt, C), lambda b, t: (b, t, 0)),
                pl.BlockSpec((C, 3 * C), lambda b, t: (0, 0)),
                pl.BlockSpec((1, 3 * C), lambda b, t: (0, 0)),
            ],
            out_specs=[pl.BlockSpec((1, tt, C), lambda b, t: (b, t, 0)),
                       pl.BlockSpec((1, tt, 2 * C), lambda b, t: (b, t, 0))],
        ),
        compiler_params=_mosaic_params(("parallel", "parallel"), proj_vmem),
    )(x, wqkv, bqkv)

    # ---------------- pass 2: flash attention + output projection -----------
    # Lower-triangular flattened grid via scalar-prefetched (qi, ki) tables:
    # fully-masked K tiles are never visited, so neither their grid steps nor
    # their K/V DMAs are paid for.
    nq = T // tq
    pairs = [(qi, ki) for qi in range(nq) for ki in range(qi + 1)]
    qi_tab = jnp.asarray([p[0] for p in pairs], dtype=jnp.int32)
    ki_tab = jnp.asarray([p[1] for p in pairs], dtype=jnp.int32)
    n_steps = len(pairs)

    flash_vmem = (2 * tq * C * cd.itemsize            # q tiles
                  + 2 * tk * 2 * C * cd.itemsize      # kv tiles
                  + 2 * C * C * cd.itemsize           # Wproj (double buffered)
                  + 2 * C * 4                         # bproj
                  + 2 * tq * C * xd.itemsize          # output tiles
                  + 2 * n_head * tq * 4 * 2           # m, l scratch
                  + tq * C * 4                        # acc scratch
                  + n_head * tq * tk * 4)             # s / p temporary headroom

    grid_spec = pltpu.PrefetchScalarGridSpec(
        num_scalar_prefetch=2,
        grid=(B, n_steps),
        in_specs=[
            pl.BlockSpec((1, tq, C), lambda b, s, qt, kt: (b, qt[s], 0)),
            pl.BlockSpec((1, tk, 2 * C), lambda b, s, qt, kt: (b, kt[s], 0)),
            # Grid-invariant weights.  TODO(synk): pipeline_mode=pl.Buffered(1)
            # / weight tiling over a grid axis for large C (v7x 64 MiB VMEM).
            pl.BlockSpec((C, C), lambda b, s, qt, kt: (0, 0)),
            pl.BlockSpec((1, C), lambda b, s, qt, kt: (0, 0)),
        ],
        out_specs=pl.BlockSpec((1, tq, C), lambda b, s, qt, kt: (b, qt[s], 0)),
        scratch_shapes=[
            pltpu.VMEM((n_head, tq, 1), jnp.float32),   # running max  m
            pltpu.VMEM((n_head, tq, 1), jnp.float32),   # running sum  l
            pltpu.VMEM((tq, C), jnp.float32),           # un-normalized output
        ],
    )

    return pl.pallas_call(
        partial(_flash_attn_kernel, n_head=n_head),
        out_shape=jax.ShapeDtypeStruct((B, T, C), x.dtype),
        grid_spec=grid_spec,
        # The flattened triangular axis mixes Q tiles with the K reduction, so
        # it must be "arbitrary"; batch stays "parallel".  On v7x, switch the
        # batch axis to pltpu.CORE_PARALLEL if xprof shows one idle TensorCore.
        compiler_params=_mosaic_params(("parallel", "arbitrary"), flash_vmem),
    )(qi_tab, ki_tab, q, kv, wp, bp)


def _reference(x, params, n_head):
    """Pure-JAX f32 reference mirroring the PyTorch forward (eval mode)."""
    B, T, C = x.shape
    hd = C // n_head

    def lin(t, w, b):
        return t @ w + b

    q = lin(x, params["wq"], params["bq"]).reshape(B, T, n_head, hd).transpose(0, 2, 1, 3)
    k = lin(x, params["wk"], params["bk"]).reshape(B, T, n_head, hd).transpose(0, 2, 1, 3)
    v = lin(x, params["wv"], params["bv"]).reshape(B, T, n_head, hd).transpose(0, 2, 1, 3)

    att = jnp.einsum("bhqd,bhkd->bhqk", q, k) * (1.0 / math.sqrt(hd))
    mask = jnp.tril(jnp.ones((T, T)))[None, None]
    att = jnp.where(mask == 0, -1e10, att)
    att = jax.nn.softmax(att, axis=-1)
    y = jnp.einsum("bhqk,bhkd->bhqd", att, v)
    y = y.transpose(0, 2, 1, 3).reshape(B, T, C)
    return lin(y, params["wp"], params["bp"])


if __name__ == "__main__":
    # Small demo: head_dim = C // n_head = 128 (lane-dense fast path);
    # T = 512 with 256-wide tiles exercises the multi-tile triangular grid.
    B, T, C, n_head = 2, 512, 256, 2

    key = jax.random.PRNGKey(0)
    ks = jax.random.split(key, 9)
    wscale = 1.0 / math.sqrt(C)
    params = {
        "wq": jax.random.normal(ks[0], (C, C), jnp.float32) * wscale,
        "bq": jax.random.normal(ks[1], (C,), jnp.float32) * 0.1,
        "wk": jax.random.normal(ks[2], (C, C), jnp.float32) * wscale,
        "bk": jax.random.normal(ks[3], (C,), jnp.float32) * 0.1,
        "wv": jax.random.normal(ks[4], (C, C), jnp.float32) * wscale,
        "bv": jax.random.normal(ks[5], (C,), jnp.float32) * 0.1,
        "wp": jax.random.normal(ks[6], (C, C), jnp.float32) * wscale,
        "bp": jax.random.normal(ks[7], (C,), jnp.float32) * 0.1,
    }
    x = jax.random.normal(ks[8], (B, T, C), jnp.float32)

    y_ref = _reference(x, params, n_head)

    # f32 compute path: tight algorithmic-correctness check.
    y32 = jax.block_until_ready(
        synthesizer_attention(x, params, n_head, compute_dtype=jnp.float32))
    assert y32.shape == (B, T, C)
    err32 = jnp.max(jnp.abs(y32 - y_ref))
    assert jnp.allclose(y32, y_ref, atol=2e-3, rtol=2e-3), (
        f"f32 kernel mismatch vs reference (max abs err {err32})")

    # bf16 compute path (production default): bf16-MXU numerics, looser check.
    y16 = jax.block_until_ready(synthesizer_attention(x, params, n_head))
    assert y16.shape == (B, T, C)
    err16 = jnp.max(jnp.abs(y16 - y_ref))
    mean16 = jnp.mean(jnp.abs(y16 - y_ref))
    assert (err16 < 1e-1) and (mean16 < 1.5e-2), (
        f"bf16 kernel mismatch vs reference (max {err16}, mean {mean16})")

    print("KERNEL_OK")
</pallas_src>

<mosaic_0001>
module attributes {stable_mosaic.version = 11 : i64} {
  func.func @_qkv_proj_kernel(%arg0: i32, %arg1: i32, %arg2: memref<1x256x256xf32, #tpu.memory_space<vmem>>, %arg3: memref<256x768xf32, #tpu.memory_space<vmem>>, %arg4: memref<1x768xf32, #tpu.memory_space<vmem>>, %arg5: memref<1x256x256xf32, #tpu.memory_space<vmem>>, %arg6: memref<1x256x512xf32, #tpu.memory_space<vmem>>) attributes {dimension_semantics = [#tpu.dimension_semantics<parallel>, #tpu.dimension_semantics<parallel>], iteration_bounds = array<i64: 2, 2>, scalar_prefetch = 0 : i64, scratch_operands = 0 : i64, tpu.core_type = #tpu.core_type<tc>, window_params = [{transform_indices = @transform_0, window_bounds = array<i64: 1, 256, 256>}, {pipeline_mode = #tpu.pipeline_mode<synchronous>, transform_indices = @transform_1, window_bounds = array<i64: 256, 768>}, {pipeline_mode = #tpu.pipeline_mode<synchronous>, transform_indices = @transform_2, window_bounds = array<i64: 1, 768>}, {transform_indices = @transform_3, window_bounds = array<i64: 1, 256, 256>}, {transform_indices = @transform_4, window_bounds = array<i64: 1, 256, 512>}]} {
    %c0 = arith.constant 0 : index
    %c0_0 = arith.constant 0 : index
    %c0_1 = arith.constant 0 : index
    %0 = vector.load %arg2[%c0, %c0_0, %c0_1] : memref<1x256x256xf32, #tpu.memory_space<vmem>>, vector<1x256x256xf32>
    %1 = vector.shape_cast %0 : vector<1x256x256xf32> to vector<256x256xf32>
    %c0_2 = arith.constant 0 : index
    %c0_3 = arith.constant 0 : index
    %2 = vector.load %arg3[%c0_2, %c0_3] : memref<256x768xf32, #tpu.memory_space<vmem>>, vector<256x768xf32>
    %cst = arith.constant dense<0.000000e+00> : vector<256x768xf32>
    %3 = tpu.matmul %1, %2, %cst {dimension_numbers = #tpu.dot_dimension_numbers<[1], [0], [0], [1], [0, 0, 1, 1], [], []>} : vector<256x256xf32>, vector<256x768xf32>, vector<256x768xf32> -> vector<256x768xf32>
    %c0_4 = arith.constant 0 : index
    %c0_5 = arith.constant 0 : index
    %4 = vector.load %arg4[%c0_4, %c0_5] : memref<1x768xf32, #tpu.memory_space<vmem>>, vector<1x768xf32>
    %5 = vector.shape_cast %4 : vector<1x768xf32> to vector<768xf32>
    %6 = vector.shape_cast %5 : vector<768xf32> to vector<1x768xf32>
    %7 = vector.broadcast %6 : vector<1x768xf32> to vector<256x768xf32>
    %8 = arith.addf %3, %7 : vector<256x768xf32>
    %9 = vector.extract_strided_slice %8 {offsets = [0, 0], sizes = [256, 256], strides = [1, 1]} : vector<256x768xf32> to vector<256x256xf32>
    %c0_6 = arith.constant 0 : index
    %c0_7 = arith.constant 0 : index
    %c0_8 = arith.constant 0 : index
    %10 = vector.load %arg5[%c0_6, %c0_7, %c0_8] : memref<1x256x256xf32, #tpu.memory_space<vmem>>, vector<1x256x256xf32>
    %11 = vector.shape_cast %10 : vector<1x256x256xf32> to vector<256x256xf32>
    %12 = vector.shape_cast %9 : vector<256x256xf32> to vector<1x256x256xf32>
    tpu.vector_store %arg5[%c0_6, %c0_7, %c0_8], %12 {strides = array<i32>} : memref<1x256x256xf32, #tpu.memory_space<vmem>>, vector<1x256x256xf32>,
    %13 = vector.extract_strided_slice %8 {offsets = [0, 256], sizes = [256, 512], strides = [1, 1]} : vector<256x768xf32> to vector<256x512xf32>
    %c0_9 = arith.constant 0 : index
    %c0_10 = arith.constant 0 : index
    %c0_11 = arith.constant 0 : index
    %14 = vector.load %arg6[%c0_9, %c0_10, %c0_11] : memref<1x256x512xf32, #tpu.memory_space<vmem>>, vector<1x256x512xf32>
    %15 = vector.shape_cast %14 : vector<1x256x512xf32> to vector<256x512xf32>
    %16 = vector.shape_cast %13 : vector<256x512xf32> to vector<1x256x512xf32>
    tpu.vector_store %arg6[%c0_9, %c0_10, %c0_11], %16 {strides = array<i32>} : memref<1x256x512xf32, #tpu.memory_space<vmem>>, vector<1x256x512xf32>,
    return
  }
  func.func @transform_0(%arg0: i32, %arg1: i32) -> (i32, i32, i32) {
    %c0_i32 = arith.constant 0 : i32
    %c0_i32_0 = arith.constant 0 : i32
    return %arg0, %arg1, %c0_i32 : i32, i32, i32
  }
  func.func @transform_1(%arg0: i32, %arg1: i32) -> (i32, i32) {
    %c0_i32 = arith.constant 0 : i32
    %c0_i32_0 = arith.constant 0 : i32
    %c0_i32_1 = arith.constant 0 : i32
    return %c0_i32, %c0_i32_0 : i32, i32
  }
  func.func @transform_2(%arg0: i32, %arg1: i32) -> (i32, i32) {
    %c0_i32 = arith.constant 0 : i32
    %c0_i32_0 = arith.constant 0 : i32
    %c0_i32_1 = arith.constant 0 : i32
    return %c0_i32, %c0_i32_0 : i32, i32
  }
  func.func @transform_3(%arg0: i32, %arg1: i32) -> (i32, i32, i32) {
    %c0_i32 = arith.constant 0 : i32
    %c0_i32_0 = arith.constant 0 : i32
    return %arg0, %arg1, %c0_i32 : i32, i32, i32
  }
  func.func @transform_4(%arg0: i32, %arg1: i32) -> (i32, i32, i32) {
    %c0_i32 = arith.constant 0 : i32
    %c0_i32_0 = arith.constant 0 : i32
    return %arg0, %arg1, %c0_i32 : i32, i32, i32
  }
}

</mosaic_0001>

<llo_original>
// kernel: tpu_custom_call.1
$region0: #{tpu_custom_call.1}
  #allocation0 [shape = 'u32[]', space=smem, size = 0x4, offset = 0x4, fixed_abs, tag = 'smem constant byte address 0x4 - core index']
  #allocation1 [shape = 'u32[144,128]{1,0:T(1,128)}', space=vmem, size = 0x12000, scoped, tag = 'internal scratch']
  %s0 = inlined_call_operand.hbm [shape: f32[2,512,256], index: 0, kind: input, shape index: {}]
  %s1 = inlined_call_operand.hbm [shape: f32[256,768], index: 1, kind: input, shape index: {}]
  %s2 = inlined_call_operand.hbm [shape: f32[1,768], index: 2, kind: input, shape index: {}]
  %s3 = inlined_call_operand.hbm [shape: f32[2,512,256], index: 3, kind: output, shape index: {0}]
  %s4 = inlined_call_operand.hbm [shape: f32[2,512,512], index: 4, kind: output, shape index: {1}]
  %5 = xla_tuple %s3, %s4
  %s6 = sld [smem:[#allocation0]]
  $region65: #{tpu_custom_call.1} parent=0
    _
  %s8 = ssub.s32 1, %s6
  %s9 = scalar_select 0, %s8, %s6
  $region1: #{tpu_custom_call.1} parent=0
    #allocation2 [shape = 'u8[524288]{0}', space=vmem, size = 0x80000, scoped, tag = 'input window, operand 0']
    #allocation3 [shape = 's32[2]{0}', space=sflag, size = 0x8, scoped, tag = 'scoped memory for tpu_custom_call.1']
    #allocation4 [shape = 's32[2]{0}', space=sflag, size = 0x8, scoped, tag = 'scoped memory for tpu_custom_call.1']
    #allocation5 [shape = 'u8[786432]{0}', space=vmem, size = 0xc0000, scoped, tag = 'input window, operand 1, single buffered']
    #allocation6 [shape = 's32[1]{0}', space=sflag, size = 0x4, scoped, tag = 'scoped memory for tpu_custom_call.1']
    #allocation7 [shape = 'u8[3072]{0}', space=vmem, size = 0xc00, scoped, tag = 'input window, operand 2, single buffered']
    #allocation8 [shape = 'u8[524288]{0}', space=vmem, size = 0x80000, scoped, tag = 'output window, operand 0']
    #allocation9 [shape = 'u8[1048576]{0}', space=vmem, size = 0x100000, scoped, tag = 'output window, operand 1']
    #allocation10 [shape = 's32[2]{0}', space=sflag, size = 0x8, scoped, tag = 'scoped memory for tpu_custom_call.1']
    %10 = vsyncpa [#allocation3], 0
    %s11 = scalar_lea.sflag [#allocation3], 1
    %12 = vsyncpa %s11, 0
    %13 = vsyncpa [#allocation6], 0
    %14 = vsyncpa [#allocation4], 0
    %s15 = scalar_lea.sflag [#allocation4], 1
    %16 = vsyncpa %s15, 0
    %17 = vsyncpa [#allocation10], 0
    %s18 = scalar_lea.sflag [#allocation10], 1
    %19 = vsyncpa %s18, 0
    loop: start=0, step=1, limit=6
    $region2: #{tpu_custom_call.1} parent=1 // loop_pre_header
      _
    $region3: #{tpu_custom_call.1} parent=1 // loop_header
      %s21 = sphi 0, %s25
      %p22 = scmp.ge.s32.totalorder %s21, 6
      %s28 = sphi 0, %s40
      %s29 = sphi 0, %s36
      %s30 = sphi 0, %s28
      %s31 = sphi 0, %s29
      %s32 = sphi 0, %s30
      %s33 = sphi 0, %s31
      %s45 = sphi 0, %s47
      %s48 = sphi 0, %s45
      %s49 = sphi 0, %s48
      %s65 = sphi 0, %s49
      %s69 = sphi 0, %s69
      %s71 = sphi 0, %s69
      %s72 = sphi 0, %s71
      %s86 = sphi 0, %s72
      %s90 = sphi 0, %s90
      %s92 = sphi 0, %s90
      %s93 = sphi 0, %s92
      %s107 = sphi 0, %s93
      %s115 = sphi 0, %s117
      %s118 = sphi 0, %s115
      %s119 = sphi 0, %s118
      %s135 = sphi 0, %s119
      %s143 = sphi 0, %s145
      %s146 = sphi 0, %s143
      %s147 = sphi 0, %s146
      %s163 = sphi 0, %s147
    $region4: #{tpu_custom_call.1} parent=1 // loop_header_branch
      %24 = sbr.rel (%p22) target = $region8
    $region5: #{tpu_custom_call.1} parent=1 // loop_body
      %s26 = ssub.s32 %s21, 1
      %s27 = ssub.s32 %s21, 2
      %s34 = sadd.s32 1, %s29
      %p35 = scmp.ge.s32.totalorder %s34, 2
      %s36 = scalar_select %p35, 0, %s34
      %s37 = sadd.s32 1, %s28
      %s38 = scalar_select %p35, %s37, %s28
      %p39 = scmp.ge.s32.totalorder %s38, 2
      %s40 = scalar_select %p39, 0, %s38
      %s41 = ssub.s32 %s28, %s40
      %s42 = ssub.s32 %s29, %s36
      %s43 = sor.u32 %s41, %s42
      %p44 = scmp.eq.s32.totalorder %s43, 0
      %s46 = sadd.s32 %s45, 1
      %s47 = scalar_select %p44, %s45, %s46
      %p50 = pneg %p44
      %p51 = scmp.eq.s32.totalorder %s21, 3
      %p52 = por %p50, %p51
      %p53 = scmp.ne.s32.totalorder %s45, %s48
      %p54 = scmp.eq.s32.totalorder %s21, 0
      %p55 = por %p53, %p54
      %p56 = scmp.ne.s32.totalorder %s45, %s48
      %p57 = scmp.eq.s32.totalorder %s26, 3
      %p58 = por %p56, %p57
      %p59 = scmp.ne.s32.totalorder %s48, %s49
      %p60 = scmp.eq.s32.totalorder %s26, 0
      %p61 = por %p59, %p60
      %p62 = scmp.ne.s32.totalorder %s48, %s49
      %p63 = scmp.eq.s32.totalorder %s27, 3
      %p64 = por %p62, %p63
      %p66 = scmp.ne.s32.totalorder %s49, %s65
      %p67 = scmp.eq.s32.totalorder %s27, 0
      %p68 = por %p66, %p67
      %s70 = sadd.s32 %s69, 1
      %p73 = scmp.eq.s32.totalorder %s21, 3
      %p74 = scmp.ne.s32.totalorder %s69, %s71
      %p75 = scmp.eq.s32.totalorder %s21, 0
      %p76 = por %p74, %p75
      %p77 = scmp.ne.s32.totalorder %s69, %s71
      %p78 = scmp.eq.s32.totalorder %s26, 3
      %p79 = por %p77, %p78
      %p80 = scmp.ne.s32.totalorder %s71, %s72
      %p81 = scmp.eq.s32.totalorder %s26, 0
      %p82 = por %p80, %p81
      %p83 = scmp.ne.s32.totalorder %s71, %s72
      %p84 = scmp.eq.s32.totalorder %s27, 3
      %p85 = por %p83, %p84
      %p87 = scmp.ne.s32.totalorder %s72, %s86
      %p88 = scmp.eq.s32.totalorder %s27, 0
      %p89 = por %p87, %p88
      %s91 = sadd.s32 %s90, 1
      %p94 = scmp.eq.s32.totalorder %s21, 3
      %p95 = scmp.ne.s32.totalorder %s90, %s92
      %p96 = scmp.eq.s32.totalorder %s21, 0
      %p97 = por %p95, %p96
      %p98 = scmp.ne.s32.totalorder %s90, %s92
      %p99 = scmp.eq.s32.totalorder %s26, 3
      %p100 = por %p98, %p99
      %p101 = scmp.ne.s32.totalorder %s92, %s93
      %p102 = scmp.eq.s32.totalorder %s26, 0
      %p103 = por %p101, %p102
      %p104 = scmp.ne.s32.totalorder %s92, %s93
      %p105 = scmp.eq.s32.totalorder %s27, 3
      %p106 = por %p104, %p105
      %p108 = scmp.ne.s32.totalorder %s93, %s107
      %p109 = scmp.eq.s32.totalorder %s27, 0
      %p110 = por %p108, %p109
      %s111 = ssub.s32 %s28, %s40
      %s112 = ssub.s32 %s29, %s36
      %s113 = sor.u32 %s111, %s112
      %p114 = scmp.eq.s32.totalorder %s113, 0
      %s116 = sadd.s32 %s115, 1
      %s117 = scalar_select %p114, %s115, %s116
      %p120 = pneg %p114
      %p121 = scmp.eq.s32.totalorder %s21, 3
      %p122 = por %p120, %p121
      %p123 = scmp.ne.s32.totalorder %s115, %s118
      %p124 = scmp.eq.s32.totalorder %s21, 0
      %p125 = por %p123, %p124
      %p126 = scmp.ne.s32.totalorder %s115, %s118
      %p127 = scmp.eq.s32.totalorder %s26, 3
      %p128 = por %p126, %p127
      %p129 = scmp.ne.s32.totalorder %s118, %s119
      %p130 = scmp.eq.s32.totalorder %s26, 0
      %p131 = por %p129, %p130
      %p132 = scmp.ne.s32.totalorder %s118, %s119
      %p133 = scmp.eq.s32.totalorder %s27, 3
      %p134 = por %p132, %p133
      %p136 = scmp.ne.s32.totalorder %s119, %s135
      %p137 = scmp.eq.s32.totalorder %s27, 0
      %p138 = por %p136, %p137
      %s139 = ssub.s32 %s28, %s40
      %s140 = ssub.s32 %s29, %s36
      %s141 = sor.u32 %s139, %s140
      %p142 = scmp.eq.s32.totalorder %s141, 0
      %s144 = sadd.s32 %s143, 1
      %s145 = scalar_select %p142, %s143, %s144
      %p148 = pneg %p142
      %p149 = scmp.eq.s32.totalorder %s21, 3
      %p150 = por %p148, %p149
      %p151 = scmp.ne.s32.totalorder %s143, %s146
      %p152 = scmp.eq.s32.totalorder %s21, 0
      %p153 = por %p151, %p152
      %p154 = scmp.ne.s32.totalorder %s143, %s146
      %p155 = scmp.eq.s32.totalorder %s26, 3
      %p156 = por %p154, %p155
      %p157 = scmp.ne.s32.totalorder %s146, %s147
      %p158 = scmp.eq.s32.totalorder %s26, 0
      %p159 = por %p157, %p158
      %p160 = scmp.ne.s32.totalorder %s146, %s147
      %p161 = scmp.eq.s32.totalorder %s27, 3
      %p162 = por %p160, %p161
      %p164 = scmp.ne.s32.totalorder %s147, %s163
      %p165 = scmp.eq.s32.totalorder %s27, 0
      %p166 = por %p164, %p165
      %p167 = scmp.le.s32.totalorder 1, %s21
      %p168 = scmp.lt.s32.totalorder %s21, 5
      %p169 = pnand %p167, %p168
      %p170 = pneg %p169
      // Predicated region
      $region9: #{tpu_custom_call.1} parent=5 // pred_check
        _
      $region10: #{tpu_custom_call.1} parent=5 // pred_check_branch
        %172 = sbr.rel (%p169) target = $region12
      $region11: #{tpu_custom_call.1} parent=5 // pred_region
        %s173 = ssub.s32 %s21, 1
        // Predicated region
        $region13: #{tpu_custom_call.1} parent=11 // pred_check
          %p174 = pneg %p82
        $region14: #{tpu_custom_call.1} parent=11 // pred_check_branch
          %176 = sbr.rel (%p174) target = $region16
        $region15: #{tpu_custom_call.1} parent=11 // pred_region
          %s178 = ssub.s32 24576, 24576
          %179 = vsyncadd [#allocation6], %s178
          %s180 = sshll.u32 [#allocation5], 4
          %s181 = int_to_ptr.vmem [resolvable:$true] %s180
          %186 = dma.hbm_to_vmem [thread:$0]  %s1, 24576, %s181, [#allocation6], 768, 768, 48
        $region16: #{tpu_custom_call.1} parent=11 // pred_fallthru
          _
        // Predicated region
        $region17: #{tpu_custom_call.1} parent=11 // pred_check
          %p187 = pneg %p103
        $region18: #{tpu_custom_call.1} parent=11 // pred_check_branch
          %189 = sbr.rel (%p187) target = $region20
        $region19: #{tpu_custom_call.1} parent=11 // pred_region
          %s191 = ssub.s32 96, 96
          %192 = vsyncadd [#allocation6], %s191
          %s194 = sshll.u32 [#allocation7], 4
          %s195 = int_to_ptr.vmem [resolvable:$true] %s194
          %197 = dma.hbm_to_vmem [thread:$0]  %s2, 96, %s195, [#allocation6]
        $region20: #{tpu_custom_call.1} parent=11 // pred_fallthru
          _
      $region12: #{tpu_custom_call.1} parent=5 // pred_fallthru
        _
      %p198 = scmp.lt.s32.totalorder %s21, 4
      // Predicated region
      $region21: #{tpu_custom_call.1} parent=5 // pred_check
        %p199 = pneg %p198
      $region22: #{tpu_custom_call.1} parent=5 // pred_check_branch
        %201 = sbr.rel (%p199) target = $region24
      $region23: #{tpu_custom_call.1} parent=5 // pred_region
        // Predicated region
        $region25: #{tpu_custom_call.1} parent=23 // pred_check
          %p202 = pneg %p55
        $region26: #{tpu_custom_call.1} parent=23 // pred_check_branch
          %204 = sbr.rel (%p202) target = $region28
        $region27: #{tpu_custom_call.1} parent=23 // pred_region
          %s205 = sand.u32 %s45, 1
          %s206 = scalar_lea.sflag [#allocation3], %s205
          %s207 = sand.u32 %s45, 1
          %s208 = smul.addr %s207, 512
          %s209 = scalar_lea.vmem [#allocation2], %s208
          %s210 = smul.u32 32, %s29
          %s212 = ssub.s32 8192, 8192
          %213 = vsyncadd %s206, %s212
          %s214 = smul.addr %s210, 2
          %s215 = smul.addr %s28, 128
          %s216 = sadd.s32 %s214, %s215
          %s217 = smul.addr %s216, 128
          %s218 = scalar_lea.hbm %s0, %s217
          %s219 = sshll.u32 %s209, 4
          %s220 = int_to_ptr.vmem [resolvable:$true] %s219
          %225 = dma.hbm_to_vmem [thread:$0]  %s218, 8192, %s220, %s206, 256, 256, 16
        $region28: #{tpu_custom_call.1} parent=23 // pred_fallthru
          _
      $region24: #{tpu_custom_call.1} parent=5 // pred_fallthru
        _
      %p226 = scmp.le.s32.totalorder 1, %s21
      %p227 = scmp.lt.s32.totalorder %s21, 5
      %p228 = pnand %p226, %p227
      %p229 = pneg %p228
      // Predicated region
      $region29: #{tpu_custom_call.1} parent=5 // pred_check
        _
      $region30: #{tpu_custom_call.1} parent=5 // pred_check_branch
        %231 = sbr.rel (%p228) target = $region32
      $region31: #{tpu_custom_call.1} parent=5 // pred_region
        %s232 = ssub.s32 %s21, 1
        %s233 = sand.u32 %s48, 1
        %s234 = scalar_lea.sflag [#allocation3], %s233
        %s235 = sand.u32 %s48, 1
        %s236 = smul.addr %s235, 512
        %s237 = scalar_lea.vmem [#allocation2], %s236
        // Predicated region
        $region33: #{tpu_custom_call.1} parent=31 // pred_check
          %p238 = pneg %p61
        $region34: #{tpu_custom_call.1} parent=31 // pred_check_branch
          %240 = sbr.rel (%p238) target = $region36
        $region35: #{tpu_custom_call.1} parent=31 // pred_region
          %241 = dma.done %s234, 8192
        $region36: #{tpu_custom_call.1} parent=31 // pred_fallthru
          _
        // Predicated region
        $region37: #{tpu_custom_call.1} parent=31 // pred_check
          %p242 = pneg %p82
        $region38: #{tpu_custom_call.1} parent=31 // pred_check_branch
          %244 = sbr.rel (%p242) target = $region40
        $region39: #{tpu_custom_call.1} parent=31 // pred_region
          %245 = dma.done [#allocation6], 24576
        $region40: #{tpu_custom_call.1} parent=31 // pred_fallthru
          _
        // Predicated region
        $region41: #{tpu_custom_call.1} parent=31 // pred_check
          %p246 = pneg %p103
        $region42: #{tpu_custom_call.1} parent=31 // pred_check_branch
          %248 = sbr.rel (%p246) target = $region44
        $region43: #{tpu_custom_call.1} parent=31 // pred_region
          %249 = dma.done [#allocation6], 96
        $region44: #{tpu_custom_call.1} parent=31 // pred_fallthru
          _
        %s250 = sand.u32 %s48, 1
        %s251 = scalar_lea.sflag [#allocation3], %s250
        %s252 = sand.u32 %s48, 1
        %s253 = smul.addr %s252, 512
        %s254 = scalar_lea.vmem [#allocation2], %s253
        %p255 = pneg %p61
        %p256 = pneg %p58
        %p257 = pneg %p82
        %p258 = pneg %p79
        %p259 = pneg %p103
        %p260 = pneg %p100
        %p261 = pneg %p131
        %p262 = pneg %p128
        %s263 = sand.u32 %s118, 1
        %s264 = scalar_lea.sflag [#allocation4], %s263
        %s265 = sand.u32 %s118, 1
        %s266 = smul.addr %s265, 512
        %s267 = scalar_lea.vmem [#allocation8], %s266
        %p268 = pneg %p159
        %p269 = pneg %p156
        %s270 = sand.u32 %s146, 1
        %s271 = scalar_lea.sflag [#allocation10], %s270
        %s272 = sand.u32 %s146, 1
        %s273 = smul.addr %s272, 1024
        %s274 = scalar_lea.vmem [#allocation9], %s273
        %s275 = smul.u32 32, %s31
        %s276 = smul.u32 32, %s31
        %s277 = smul.u32 32, %s31
        %v278 = vld [vmem:[%s237] sm:$0xff]
        %v279 = vld [vmem:[%s237 + $0x8] sm:$0xff]
        %v280 = vld [vmem:[%s237 + $0x10] sm:$0xff]
        %v281 = vld [vmem:[%s237 + $0x18] sm:$0xff]
        %v282 = vld [vmem:[%s237 + $0x20] sm:$0xff]
        %v283 = vld [vmem:[%s237 + $0x28] sm:$0xff]
        %v284 = vld [vmem:[%s237 + $0x30] sm:$0xff]
        %v285 = vld [vmem:[%s237 + $0x38] sm:$0xff]
        %v286 = vld [vmem:[%s237 + $0x40] sm:$0xff]
        %v287 = vld [vmem:[%s237 + $0x48] sm:$0xff]
        %v288 = vld [vmem:[%s237 + $0x50] sm:$0xff]
        %v289 = vld [vmem:[%s237 + $0x58] sm:$0xff]
        %v290 = vld [vmem:[%s237 + $0x60] sm:$0xff]
        %v291 = vld [vmem:[%s237 + $0x68] sm:$0xff]
        %v292 = vld [vmem:[%s237 + $0x70] sm:$0xff]
        %v293 = vld [vmem:[%s237 + $0x78] sm:$0xff]
        %v294 = vld [vmem:[%s237 + $0x80] sm:$0xff]
        %v295 = vld [vmem:[%s237 + $0x88] sm:$0xff]
        %v296 = vld [vmem:[%s237 + $0x90] sm:$0xff]
        %v297 = vld [vmem:[%s237 + $0x98] sm:$0xff]
        %v298 = vld [vmem:[%s237 + $0xa0] sm:$0xff]
        %v299 = vld [vmem:[%s237 + $0xa8] sm:$0xff]
        %v300 = vld [vmem:[%s237 + $0xb0] sm:$0xff]
        %v301 = vld [vmem:[%s237 + $0xb8] sm:$0xff]
        %v302 = vld [vmem:[%s237 + $0xc0] sm:$0xff]
        %v303 = vld [vmem:[%s237 + $0xc8] sm:$0xff]
        %v304 = vld [vmem:[%s237 + $0xd0] sm:$0xff]
        %v305 = vld [vmem:[%s237 + $0xd8] sm:$0xff]
        %v306 = vld [vmem:[%s237 + $0xe0] sm:$0xff]
        %v307 = vld [vmem:[%s237 + $0xe8] sm:$0xff]
        %v308 = vld [vmem:[%s237 + $0xf0] sm:$0xff]
        %v309 = vld [vmem:[%s237 + $0xf8] sm:$0xff]
        %v310 = vld [vmem:[%s237 + $0x100] sm:$0xff]
        %v311 = vld [vmem:[%s237 + $0x108] sm:$0xff]
        %v312 = vld [vmem:[%s237 + $0x110] sm:$0xff]
        %v313 = vld [vmem:[%s237 + $0x118] sm:$0xff]
        %v314 = vld [vmem:[%s237 + $0x120] sm:$0xff]
        %v315 = vld [vmem:[%s237 + $0x128] sm:$0xff]
        %v316 = vld [vmem:[%s237 + $0x130] sm:$0xff]
        %v317 = vld [vmem:[%s237 + $0x138] sm:$0xff]
        %v318 = vld [vmem:[%s237 + $0x140] sm:$0xff]
        %v319 = vld [vmem:[%s237 + $0x148] sm:$0xff]
        %v320 = vld [vmem:[%s237 + $0x150] sm:$0xff]
        %v321 = vld [vmem:[%s237 + $0x158] sm:$0xff]
        %v322 = vld [vmem:[%s237 + $0x160] sm:$0xff]
        %v323 = vld [vmem:[%s237 + $0x168] sm:$0xff]
        %v324 = vld [vmem:[%s237 + $0x170] sm:$0xff]
        %v325 = vld [vmem:[%s237 + $0x178] sm:$0xff]
        %v326 = vld [vmem:[%s237 + $0x180] sm:$0xff]
        %v327 = vld [vmem:[%s237 + $0x188] sm:$0xff]
        %v328 = vld [vmem:[%s237 + $0x190] sm:$0xff]
        %v329 = vld [vmem:[%s237 + $0x198] sm:$0xff]
        %v330 = vld [vmem:[%s237 + $0x1a0] sm:$0xff]
        %v331 = vld [vmem:[%s237 + $0x1a8] sm:$0xff]
        %v332 = vld [vmem:[%s237 + $0x1b0] sm:$0xff]
        %v333 = vld [vmem:[%s237 + $0x1b8] sm:$0xff]
        %v334 = vld [vmem:[%s237 + $0x1c0] sm:$0xff]
        %v335 = vld [vmem:[%s237 + $0x1c8] sm:$0xff]
        %v336 = vld [vmem:[%s237 + $0x1d0] sm:$0xff]
        %v337 = vld [vmem:[%s237 + $0x1d8] sm:$0xff]
        %v338 = vld [vmem:[%s237 + $0x1e0] sm:$0xff]
        %v339 = vld [vmem:[%s237 + $0x1e8] sm:$0xff]
        %v340 = vld [vmem:[%s237 + $0x1f0] sm:$0xff]
        %v341 = vld [vmem:[%s237 + $0x1f8] sm:$0xff]
        %v342 = vld [vmem:[#allocation5] sm:$0xff]
        %v343 = vld [vmem:[#allocation5 + $0x8] sm:$0xff]
        %v344 = vld [vmem:[#allocation5 + $0x10] sm:$0xff]
        %v345 = vld [vmem:[#allocation5 + $0x18] sm:$0xff]
        %v346 = vld [vmem:[#allocation5 + $0x20] sm:$0xff]
        %v347 = vld [vmem:[#allocation5 + $0x28] sm:$0xff]
        %v348 = vld [vmem:[#allocation5 + $0x30] sm:$0xff]
        %v349 = vld [vmem:[#allocation5 + $0x38] sm:$0xff]
        %v350 = vld [vmem:[#allocation5 + $0x40] sm:$0xff]
        %v351 = vld [vmem:[#allocation5 + $0x48] sm:$0xff]
        %v352 = vld [vmem:[#allocation5 + $0x50] sm:$0xff]
        %v353 = vld [vmem:[#allocation5 + $0x58] sm:$0xff]
        %v354 = vld [vmem:[#allocation5 + $0x60] sm:$0xff]
        %v355 = vld [vmem:[#allocation5 + $0x68] sm:$0xff]
        %v356 = vld [vmem:[#allocation5 + $0x70] sm:$0xff]
        %v357 = vld [vmem:[#allocation5 + $0x78] sm:$0xff]
        %v358 = vld [vmem:[#allocation5 + $0x80] sm:$0xff]
        %v359 = vld [vmem:[#allocation5 + $0x88] sm:$0xff]
        %v360 = vld [vmem:[#allocation5 + $0x90] sm:$0xff]
        %v361 = vld [vmem:[#allocation5 + $0x98] sm:$0xff]
        %v362 = vld [vmem:[#allocation5 + $0xa0] sm:$0xff]
        %v363 = vld [vmem:[#allocation5 + $0xa8] sm:$0xff]
        %v364 = vld [vmem:[#allocation5 + $0xb0] sm:$0xff]
        %v365 = vld [vmem:[#allocation5 + $0xb8] sm:$0xff]
        %v366 = vld [vmem:[#allocation5 + $0xc0] sm:$0xff]
        %v367 = vld [vmem:[#allocation5 + $0xc8] sm:$0xff]
        %v368 = vld [vmem:[#allocation5 + $0xd0] sm:$0xff]
        %v369 = vld [vmem:[#allocation5 + $0xd8] sm:$0xff]
        %v370 = vld [vmem:[#allocation5 + $0xe0] sm:$0xff]
        %v371 = vld [vmem:[#allocation5 + $0xe8] sm:$0xff]
        %v372 = vld [vmem:[#allocation5 + $0xf0] sm:$0xff]
        %v373 = vld [vmem:[#allocation5 + $0xf8] sm:$0xff]
        %v374 = vld [vmem:[#allocation5 + $0x100] sm:$0xff]
        %v375 = vld [vmem:[#allocation5 + $0x108] sm:$0xff]
        %v376 = vld [vmem:[#allocation5 + $0x110] sm:$0xff]
        %v377 = vld [vmem:[#allocation5 + $0x118] sm:$0xff]
        %v378 = vld [vmem:[#allocation5 + $0x120] sm:$0xff]
        %v379 = vld [vmem:[#allocation5 + $0x128] sm:$0xff]
        %v380 = vld [vmem:[#allocation5 + $0x130] sm:$0xff]
        %v381 = vld [vmem:[#allocation5 + $0x138] sm:$0xff]
        %v382 = vld [vmem:[#allocation5 + $0x140] sm:$0xff]
        %v383 = vld [vmem:[#allocation5 + $0x148] sm:$0xff]
        %v384 = vld [vmem:[#allocation5 + $0x150] sm:$0xff]
        %v385 = vld [vmem:[#allocation5 + $0x158] sm:$0xff]
        %v386 = vld [vmem:[#allocation5 + $0x160] sm:$0xff]
        %v387 = vld [vmem:[#allocation5 + $0x168] sm:$0xff]
        %v388 = vld [vmem:[#allocation5 + $0x170] sm:$0xff]
        %v389 = vld [vmem:[#allocation5 + $0x178] sm:$0xff]
        %v390 = vld [vmem:[#allocation5 + $0x180] sm:$0xff]
        %v391 = vld [vmem:[#allocation5 + $0x188] sm:$0xff]
        %v392 = vld [vmem:[#allocation5 + $0x190] sm:$0xff]
        %v393 = vld [vmem:[#allocation5 + $0x198] sm:$0xff]
        %v394 = vld [vmem:[#allocation5 + $0x1a0] sm:$0xff]
        %v395 = vld [vmem:[#allocation5 + $0x1a8] sm:$0xff]
        %v396 = vld [vmem:[#allocation5 + $0x1b0] sm:$0xff]
        %v397 = vld [vmem:[#allocation5 + $0x1b8] sm:$0xff]
        %v398 = vld [vmem:[#allocation5 + $0x1c0] sm:$0xff]
        %v399 = vld [vmem:[#allocation5 + $0x1c8] sm:$0xff]
        %v400 = vld [vmem:[#allocation5 + $0x1d0] sm:$0xff]
        %v401 = vld [vmem:[#allocation5 + $0x1d8] sm:$0xff]
        %v402 = vld [vmem:[#allocation5 + $0x1e0] sm:$0xff]
        %v403 = vld [vmem:[#allocation5 + $0x1e8] sm:$0xff]
        %v404 = vld [vmem:[#allocation5 + $0x1f0] sm:$0xff]
        %v405 = vld [vmem:[#allocation5 + $0x1f8] sm:$0xff]
        %v406 = vld [vmem:[#allocation5 + $0x200] sm:$0xff]
        %v407 = vld [vmem:[#allocation5 + $0x208] sm:$0xff]
        %v408 = vld [vmem:[#allocation5 + $0x210] sm:$0xff]
        %v409 = vld [vmem:[#allocation5 + $0x218] sm:$0xff]
        %v410 = vld [vmem:[#allocation5 + $0x220] sm:$0xff]
        %v411 = vld [vmem:[#allocation5 + $0x228] sm:$0xff]
        %v412 = vld [vmem:[#allocation5 + $0x230] sm:$0xff]
        %v413 = vld [vmem:[#allocation5 + $0x238] sm:$0xff]
        %v414 = vld [vmem:[#allocation5 + $0x240] sm:$0xff]
        %v415 = vld [vmem:[#allocation5 + $0x248] sm:$0xff]
        %v416 = vld [vmem:[#allocation5 + $0x250] sm:$0xff]
        %v417 = vld [vmem:[#allocation5 + $0x258] sm:$0xff]
        %v418 = vld [vmem:[#allocation5 + $0x260] sm:$0xff]
        %v419 = vld [vmem:[#allocation5 + $0x268] sm:$0xff]
        %v420 = vld [vmem:[#allocation5 + $0x270] sm:$0xff]
        %v421 = vld [vmem:[#allocation5 + $0x278] sm:$0xff]
        %v422 = vld [vmem:[#allocation5 + $0x280] sm:$0xff]
        %v423 = vld [vmem:[#allocation5 + $0x288] sm:$0xff]
        %v424 = vld [vmem:[#allocation5 + $0x290] sm:$0xff]
        %v425 = vld [vmem:[#allocation5 + $0x298] sm:$0xff]
        %v426 = vld [vmem:[#allocation5 + $0x2a0] sm:$0xff]
        %v427 = vld [vmem:[#allocation5 + $0x2a8] sm:$0xff]
        %v428 = vld [vmem:[#allocation5 + $0x2b0] sm:$0xff]
        %v429 = vld [vmem:[#allocation5 + $0x2b8] sm:$0xff]
        %v430 = vld [vmem:[#allocation5 + $0x2c0] sm:$0xff]
        %v431 = vld [vmem:[#allocation5 + $0x2c8] sm:$0xff]
        %v432 = vld [vmem:[#allocation5 + $0x2d0] sm:$0xff]
        %v433 = vld [vmem:[#allocation5 + $0x2d8] sm:$0xff]
        %v434 = vld [vmem:[#allocation5 + $0x2e0] sm:$0xff]
        %v435 = vld [vmem:[#allocation5 + $0x2e8] sm:$0xff]
        %v436 = vld [vmem:[#allocation5 + $0x2f0] sm:$0xff]
        %v437 = vld [vmem:[#allocation5 + $0x2f8] sm:$0xff]
        %v438 = vld [vmem:[#allocation5 + $0x300] sm:$0xff]
        %v439 = vld [vmem:[#allocation5 + $0x308] sm:$0xff]
        %v440 = vld [vmem:[#allocation5 + $0x310] sm:$0xff]
        %v441 = vld [vmem:[#allocation5 + $0x318] sm:$0xff]
        %v442 = vld [vmem:[#allocation5 + $0x320] sm:$0xff]
        %v443 = vld [vmem:[#allocation5 + $0x328] sm:$0xff]
        %v444 = vld [vmem:[#allocation5 + $0x330] sm:$0xff]
        %v445 = vld [vmem:[#allocation5 + $0x338] sm:$0xff]
        %v446 = vld [vmem:[#allocation5 + $0x340] sm:$0xff]
        %v447 = vld [vmem:[#allocation5 + $0x348] sm:$0xff]
        %v448 = vld [vmem:[#allocation5 + $0x350] sm:$0xff]
        %v449 = vld [vmem:[#allocation5 + $0x358] sm:$0xff]
        %v450 = vld [vmem:[#allocation5 + $0x360] sm:$0xff]
        %v451 = vld [vmem:[#allocation5 + $0x368] sm:$0xff]
        %v452 = vld [vmem:[#allocation5 + $0x370] sm:$0xff]
        %v453 = vld [vmem:[#allocation5 + $0x378] sm:$0xff]
        %v454 = vld [vmem:[#allocation5 + $0x380] sm:$0xff]
        %v455 = vld [vmem:[#allocation5 + $0x388] sm:$0xff]
        %v456 = vld [vmem:[#allocation5 + $0x390] sm:$0xff]
        %v457 = vld [vmem:[#allocation5 + $0x398] sm:$0xff]
        %v458 = vld [vmem:[#allocation5 + $0x3a0] sm:$0xff]
        %v459 = vld [vmem:[#allocation5 + $0x3a8] sm:$0xff]
        %v460 = vld [vmem:[#allocation5 + $0x3b0] sm:$0xff]
        %v461 = vld [vmem:[#allocation5 + $0x3b8] sm:$0xff]
        %v462 = vld [vmem:[#allocation5 + $0x3c0] sm:$0xff]
        %v463 = vld [vmem:[#allocation5 + $0x3c8] sm:$0xff]
        %v464 = vld [vmem:[#allocation5 + $0x3d0] sm:$0xff]
        %v465 = vld [vmem:[#allocation5 + $0x3d8] sm:$0xff]
        %v466 = vld [vmem:[#allocation5 + $0x3e0] sm:$0xff]
        %v467 = vld [vmem:[#allocation5 + $0x3e8] sm:$0xff]
        %v468 = vld [vmem:[#allocation5 + $0x3f0] sm:$0xff]
        %v469 = vld [vmem:[#allocation5 + $0x3f8] sm:$0xff]
        %v470 = vld [vmem:[#allocation5 + $0x400] sm:$0xff]
        %v471 = vld [vmem:[#allocation5 + $0x408] sm:$0xff]
        %v472 = vld [vmem:[#allocation5 + $0x410] sm:$0xff]
        %v473 = vld [vmem:[#allocation5 + $0x418] sm:$0xff]
        %v474 = vld [vmem:[#allocation5 + $0x420] sm:$0xff]
        %v475 = vld [vmem:[#allocation5 + $0x428] sm:$0xff]
        %v476 = vld [vmem:[#allocation5 + $0x430] sm:$0xff]
        %v477 = vld [vmem:[#allocation5 + $0x438] sm:$0xff]
        %v478 = vld [vmem:[#allocation5 + $0x440] sm:$0xff]
        %v479 = vld [vmem:[#allocation5 + $0x448] sm:$0xff]
        %v480 = vld [vmem:[#allocation5 + $0x450] sm:$0xff]
        %v481 = vld [vmem:[#allocation5 + $0x458] sm:$0xff]
        %v482 = vld [vmem:[#allocation5 + $0x460] sm:$0xff]
        %v483 = vld [vmem:[#allocation5 + $0x468] sm:$0xff]
        %v484 = vld [vmem:[#allocation5 + $0x470] sm:$0xff]
        %v485 = vld [vmem:[#allocation5 + $0x478] sm:$0xff]
        %v486 = vld [vmem:[#allocation5 + $0x480] sm:$0xff]
        %v487 = vld [vmem:[#allocation5 + $0x488] sm:$0xff]
        %v488 = vld [vmem:[#allocation5 + $0x490] sm:$0xff]
        %v489 = vld [vmem:[#allocation5 + $0x498] sm:$0xff]
        %v490 = vld [vmem:[#allocation5 + $0x4a0] sm:$0xff]
        %v491 = vld [vmem:[#allocation5 + $0x4a8] sm:$0xff]
        %v492 = vld [vmem:[#allocation5 + $0x4b0] sm:$0xff]
        %v493 = vld [vmem:[#allocation5 + $0x4b8] sm:$0xff]
        %v494 = vld [vmem:[#allocation5 + $0x4c0] sm:$0xff]
        %v495 = vld [vmem:[#allocation5 + $0x4c8] sm:$0xff]
        %v496 = vld [vmem:[#allocation5 + $0x4d0] sm:$0xff]
        %v497 = vld [vmem:[#allocation5 + $0x4d8] sm:$0xff]
        %v498 = vld [vmem:[#allocation5 + $0x4e0] sm:$0xff]
        %v499 = vld [vmem:[#allocation5 + $0x4e8] sm:$0xff]
        %v500 = vld [vmem:[#allocation5 + $0x4f0] sm:$0xff]
        %v501 = vld [vmem:[#allocation5 + $0x4f8] sm:$0xff]
        %v502 = vld [vmem:[#allocation5 + $0x500] sm:$0xff]
        %v503 = vld [vmem:[#allocation5 + $0x508] sm:$0xff]
        %v504 = vld [vmem:[#allocation5 + $0x510] sm:$0xff]
        %v505 = vld [vmem:[#allocation5 + $0x518] sm:$0xff]
        %v506 = vld [vmem:[#allocation5 + $0x520] sm:$0xff]
        %v507 = vld [vmem:[#allocation5 + $0x528] sm:$0xff]
        %v508 = vld [vmem:[#allocation5 + $0x530] sm:$0xff]
        %v509 = vld [vmem:[#allocation5 + $0x538] sm:$0xff]
        %v510 = vld [vmem:[#allocation5 + $0x540] sm:$0xff]
        %v511 = vld [vmem:[#allocation5 + $0x548] sm:$0xff]
        %v512 = vld [vmem:[#allocation5 + $0x550] sm:$0xff]
        %v513 = vld [vmem:[#allocation5 + $0x558] sm:$0xff]
        %v514 = vld [vmem:[#allocation5 + $0x560] sm:$0xff]
        %v515 = vld [vmem:[#allocation5 + $0x568] sm:$0xff]
        %v516 = vld [vmem:[#allocation5 + $0x570] sm:$0xff]
        %v517 = vld [vmem:[#allocation5 + $0x578] sm:$0xff]
        %v518 = vld [vmem:[#allocation5 + $0x580] sm:$0xff]
        %v519 = vld [vmem:[#allocation5 + $0x588] sm:$0xff]
        %v520 = vld [vmem:[#allocation5 + $0x590] sm:$0xff]
        %v521 = vld [vmem:[#allocation5 + $0x598] sm:$0xff]
        %v522 = vld [vmem:[#allocation5 + $0x5a0] sm:$0xff]
        %v523 = vld [vmem:[#allocation5 + $0x5a8] sm:$0xff]
        %v524 = vld [vmem:[#allocation5 + $0x5b0] sm:$0xff]
        %v525 = vld [vmem:[#allocation5 + $0x5b8] sm:$0xff]
        %v526 = vld [vmem:[#allocation5 + $0x5c0] sm:$0xff]
        %v527 = vld [vmem:[#allocation5 + $0x5c8] sm:$0xff]
        %v528 = vld [vmem:[#allocation5 + $0x5d0] sm:$0xff]
        %v529 = vld [vmem:[#allocation5 + $0x5d8] sm:$0xff]
        %v530 = vld [vmem:[#allocation5 + $0x5e0] sm:$0xff]
        %v531 = vld [vmem:[#allocation5 + $0x5e8] sm:$0xff]
        %v532 = vld [vmem:[#allocation5 + $0x5f0] sm:$0xff]
        %v533 = vld [vmem:[#allocation5 + $0x5f8] sm:$0xff]
        %v534 = vld [vmem:[#allocation7] sm:$0x3f]
        %v536 = vlaneseq
        %v537 = vshrl.u32 %v536, 7
        %v538 = vsub.s32 0, %v537
        %v539 = vrot.slane %v534, %v538
        %v540 = vlaneseq
        %v541 = vshrl.u32 %v540, 7
        %v542 = vsub.s32 1, %v541
        %v543 = vrot.slane %v534, %v542
        %v544 = vlaneseq
        %v545 = vshrl.u32 %v544, 7
        %v546 = vsub.s32 2, %v545
        %v547 = vrot.slane %v534, %v546
        %v548 = vlaneseq
        %v549 = vshrl.u32 %v548, 7
        %v550 = vsub.s32 3, %v549
        %v551 = vrot.slane %v534, %v550
        %v552 = vlaneseq
        %v553 = vshrl.u32 %v552, 7
        %v554 = vsub.s32 4, %v553
        %v555 = vrot.slane %v534, %v554
        %v556 = vlaneseq
        %v557 = vshrl.u32 %v556, 7
        %v558 = vsub.s32 5, %v557
        %v559 = vrot.slane %v534, %v558
        %566 = vmatprep.subr.mxu0 %v433
        %567 = vmatpush1.msra.mxu0 %v432
        %568 = vmatprep.subr.mxu0 %v427
        %569 = vmatpush1.msra.mxu0 %v426
        %570 = vmatprep.subr.mxu0 %v421
        %571 = vmatpush1.msra.mxu0 %v420
        %572 = vmatprep.subr.mxu0 %v415
        %573 = vmatpush1.msra.mxu0 %v414
        %574 = vmatprep.subr.mxu0 %v409
        %575 = vmatpush1.msra.mxu0 %v408
        %576 = vmatprep.subr.mxu0 %v403
        %577 = vmatpush1.msra.mxu0 %v402
        %578 = vmatprep.subr.mxu0 %v397
        %579 = vmatpush1.msra.mxu0 %v396
        %580 = vmatprep.subr.mxu0 %v391
        %581 = vmatpush1.msra.mxu0 %v390
        %582 = vmatprep.subr.mxu0 %v385
        %583 = vmatpush1.msra.mxu0 %v384
        %584 = vmatprep.subr.mxu0 %v379
        %585 = vmatpush1.msra.mxu0 %v378
        %586 = vmatprep.subr.mxu0 %v373
        %587 = vmatpush1.msra.mxu0 %v372
        %588 = vmatprep.subr.mxu0 %v367
        %589 = vmatpush1.msra.mxu0 %v366
        %590 = vmatprep.subr.mxu0 %v361
        %591 = vmatpush1.msra.mxu0 %v360
        %592 = vmatprep.subr.mxu0 %v355
        %593 = vmatpush1.msra.mxu0 %v354
        %594 = vmatprep.subr.mxu0 %v349
        %595 = vmatpush1.msra.mxu0 %v348
        %596 = vmatprep.subr.mxu0 %v343
        %597 = vmatpush1.msra.mxu0 %v342
        %598 = vmatprep.subr.mxu0 %v529
        %599 = vmatpush2.msra.mxu0 %v528
        %600 = vmatprep.subr.mxu0 %v523
        %601 = vmatpush2.msra.mxu0 %v522
        %602 = vmatprep.subr.mxu0 %v517
        %603 = vmatpush2.msra.mxu0 %v516
        %604 = vmatprep.subr.mxu0 %v511
        %605 = vmatpush2.msra.mxu0 %v510
        %606 = vmatprep.subr.mxu0 %v505
        %607 = vmatpush2.msra.mxu0 %v504
        %608 = vmatprep.subr.mxu0 %v499
        %609 = vmatpush2.msra.mxu0 %v498
        %610 = vmatprep.subr.mxu0 %v493
        %611 = vmatpush2.msra.mxu0 %v492
        %612 = vmatprep.subr.mxu0 %v487
        %613 = vmatpush2.msra.mxu0 %v486
        %614 = vmatprep.subr.mxu0 %v481
        %615 = vmatpush2.msra.mxu0 %v480
        %616 = vmatprep.subr.mxu0 %v475
        %617 = vmatpush2.msra.mxu0 %v474
        %618 = vmatprep.subr.mxu0 %v469
        %619 = vmatpush2.msra.mxu0 %v468
        %620 = vmatprep.subr.mxu0 %v463
        %621 = vmatpush2.msra.mxu0 %v462
        %622 = vmatprep.subr.mxu0 %v457
        %623 = vmatpush2.msra.mxu0 %v456
        %624 = vmatprep.subr.mxu0 %v451
        %625 = vmatpush2.msra.mxu0 %v450
        %626 = vmatprep.subr.mxu0 %v445
        %627 = vmatpush2.msra.mxu0 %v444
        %628 = vmatprep.subr.mxu0 %v439
        %629 = vmatpush2.msra.mxu0 %v438
        %630 = vmatprep.mubr.f32.mxu0 %v279
        %631 = vmatmul.mubr.f32.gmra.mxu0 %v278
        %v632 = vpop.f32.mrf.mxu0
        %v633 = vadd.f32 %v539, %v632
        %v634 = vpop.f32.mrf.mxu0
        %v635 = vadd.f32 %v543, %v634
        %636 = vmatprep.mubr.f32.mxu0 %v281
        %637 = vmatmul.mubr.f32.gmra.mxu0 %v280
        %v638 = vpop.f32.mrf.mxu0
        %v639 = vadd.f32 %v539, %v638
        %v640 = vpop.f32.mrf.mxu0
        %v641 = vadd.f32 %v543, %v640
        %642 = vmatprep.mubr.f32.mxu0 %v283
        %643 = vmatmul.mubr.f32.gmra.mxu0 %v282
        %v644 = vpop.f32.mrf.mxu0
        %v645 = vadd.f32 %v539, %v644
        %v646 = vpop.f32.mrf.mxu0
        %v647 = vadd.f32 %v543, %v646
        %648 = vmatprep.mubr.f32.mxu0 %v285
        %649 = vmatmul.mubr.f32.gmra.mxu0 %v284
        %v650 = vpop.f32.mrf.mxu0
        %v651 = vadd.f32 %v539, %v650
        %v652 = vpop.f32.mrf.mxu0
        %v653 = vadd.f32 %v543, %v652
        %654 = vmatprep.mubr.f32.mxu0 %v287
        %655 = vmatmul.mubr.f32.gmra.mxu0 %v286
        %v656 = vpop.f32.mrf.mxu0
        %v657 = vadd.f32 %v539, %v656
        %v658 = vpop.f32.mrf.mxu0
        %v659 = vadd.f32 %v543, %v658
        %660 = vmatprep.mubr.f32.mxu0 %v289
        %661 = vmatmul.mubr.f32.gmra.mxu0 %v288
        %v662 = vpop.f32.mrf.mxu0
        %v663 = vadd.f32 %v539, %v662
        %v664 = vpop.f32.mrf.mxu0
        %v665 = vadd.f32 %v543, %v664
        %666 = vmatprep.mubr.f32.mxu0 %v291
        %667 = vmatmul.mubr.f32.gmra.mxu0 %v290
        %v668 = vpop.f32.mrf.mxu0
        %v669 = vadd.f32 %v539, %v668
        %v670 = vpop.f32.mrf.mxu0
        %v671 = vadd.f32 %v543, %v670
        %672 = vmatprep.mubr.f32.mxu0 %v293
        %673 = vmatmul.mubr.f32.gmra.mxu0 %v292
        %v674 = vpop.f32.mrf.mxu0
        %v675 = vadd.f32 %v539, %v674
        %v676 = vpop.f32.mrf.mxu0
        %v677 = vadd.f32 %v543, %v676
        %678 = vmatprep.mubr.f32.mxu0 %v295
        %679 = vmatmul.mubr.f32.gmra.mxu0 %v294
        %v680 = vpop.f32.mrf.mxu0
        %v681 = vadd.f32 %v539, %v680
        %v682 = vpop.f32.mrf.mxu0
        %v683 = vadd.f32 %v543, %v682
        %684 = vmatprep.mubr.f32.mxu0 %v297
        %685 = vmatmul.mubr.f32.gmra.mxu0 %v296
        %v686 = vpop.f32.mrf.mxu0
        %v687 = vadd.f32 %v539, %v686
        %v688 = vpop.f32.mrf.mxu0
        %v689 = vadd.f32 %v543, %v688
        %690 = vmatprep.mubr.f32.mxu0 %v299
        %691 = vmatmul.mubr.f32.gmra.mxu0 %v298
        %v692 = vpop.f32.mrf.mxu0
        %v693 = vadd.f32 %v539, %v692
        %v694 = vpop.f32.mrf.mxu0
        %v695 = vadd.f32 %v543, %v694
        %696 = vmatprep.mubr.f32.mxu0 %v301
        %697 = vmatmul.mubr.f32.gmra.mxu0 %v300
        %v698 = vpop.f32.mrf.mxu0
        %v699 = vadd.f32 %v539, %v698
        %v700 = vpop.f32.mrf.mxu0
        %v701 = vadd.f32 %v543, %v700
        %702 = vmatprep.mubr.f32.mxu0 %v303
        %703 = vmatmul.mubr.f32.gmra.mxu0 %v302
        %v704 = vpop.f32.mrf.mxu0
        %v705 = vadd.f32 %v539, %v704
        %v706 = vpop.f32.mrf.mxu0
        %v707 = vadd.f32 %v543, %v706
        %708 = vmatprep.mubr.f32.mxu0 %v305
        %709 = vmatmul.mubr.f32.gmra.mxu0 %v304
        %v710 = vpop.f32.mrf.mxu0
        %v711 = vadd.f32 %v539, %v710
        %v712 = vpop.f32.mrf.mxu0
        %v713 = vadd.f32 %v543, %v712
        %714 = vmatprep.mubr.f32.mxu0 %v307
        %715 = vmatmul.mubr.f32.gmra.mxu0 %v306
        %v716 = vpop.f32.mrf.mxu0
        %v717 = vadd.f32 %v539, %v716
        %v718 = vpop.f32.mrf.mxu0
        %v719 = vadd.f32 %v543, %v718
        %720 = vmatprep.mubr.f32.mxu0 %v309
        %721 = vmatmul.mubr.f32.gmra.mxu0 %v308
        %v722 = vpop.f32.mrf.mxu0
        %v723 = vadd.f32 %v539, %v722
        %v724 = vpop.f32.mrf.mxu0
        %v725 = vadd.f32 %v543, %v724
        %726 = vmatprep.mubr.f32.mxu0 %v311
        %727 = vmatmul.mubr.f32.gmra.mxu0 %v310
        %v728 = vpop.f32.mrf.mxu0
        %v729 = vadd.f32 %v539, %v728
        %v730 = vpop.f32.mrf.mxu0
        %v731 = vadd.f32 %v543, %v730
        %732 = vmatprep.mubr.f32.mxu0 %v313
        %733 = vmatmul.mubr.f32.gmra.mxu0 %v312
        %v734 = vpop.f32.mrf.mxu0
        %v735 = vadd.f32 %v539, %v734
        %v736 = vpop.f32.mrf.mxu0
        %v737 = vadd.f32 %v543, %v736
        %738 = vmatprep.mubr.f32.mxu0 %v315
        %739 = vmatmul.mubr.f32.gmra.mxu0 %v314
        %v740 = vpop.f32.mrf.mxu0
        %v741 = vadd.f32 %v539, %v740
        %v742 = vpop.f32.mrf.mxu0
        %v743 = vadd.f32 %v543, %v742
        %744 = vmatprep.mubr.f32.mxu0 %v317
        %745 = vmatmul.mubr.f32.gmra.mxu0 %v316
        %v746 = vpop.f32.mrf.mxu0
        %v747 = vadd.f32 %v539, %v746
        %v748 = vpop.f32.mrf.mxu0
        %v749 = vadd.f32 %v543, %v748
        %750 = vmatprep.mubr.f32.mxu0 %v319
        %751 = vmatmul.mubr.f32.gmra.mxu0 %v318
        %v752 = vpop.f32.mrf.mxu0
        %v753 = vadd.f32 %v539, %v752
        %v754 = vpop.f32.mrf.mxu0
        %v755 = vadd.f32 %v543, %v754
        %756 = vmatprep.mubr.f32.mxu0 %v321
        %757 = vmatmul.mubr.f32.gmra.mxu0 %v320
        %v758 = vpop.f32.mrf.mxu0
        %v759 = vadd.f32 %v539, %v758
        %v760 = vpop.f32.mrf.mxu0
        %v761 = vadd.f32 %v543, %v760
        %762 = vmatprep.mubr.f32.mxu0 %v323
        %763 = vmatmul.mubr.f32.gmra.mxu0 %v322
        %v764 = vpop.f32.mrf.mxu0
        %v765 = vadd.f32 %v539, %v764
        %v766 = vpop.f32.mrf.mxu0
        %v767 = vadd.f32 %v543, %v766
        %768 = vmatprep.mubr.f32.mxu0 %v325
        %769 = vmatmul.mubr.f32.gmra.mxu0 %v324
        %v770 = vpop.f32.mrf.mxu0
        %v771 = vadd.f32 %v539, %v770
        %v772 = vpop.f32.mrf.mxu0
        %v773 = vadd.f32 %v543, %v772
        %774 = vmatprep.mubr.f32.mxu0 %v327
        %775 = vmatmul.mubr.f32.gmra.mxu0 %v326
        %v776 = vpop.f32.mrf.mxu0
        %v777 = vadd.f32 %v539, %v776
        %v778 = vpop.f32.mrf.mxu0
        %v779 = vadd.f32 %v543, %v778
        %780 = vmatprep.mubr.f32.mxu0 %v329
        %781 = vmatmul.mubr.f32.gmra.mxu0 %v328
        %v782 = vpop.f32.mrf.mxu0
        %v783 = vadd.f32 %v539, %v782
        %v784 = vpop.f32.mrf.mxu0
        %v785 = vadd.f32 %v543, %v784
        %786 = vmatprep.mubr.f32.mxu0 %v331
        %787 = vmatmul.mubr.f32.gmra.mxu0 %v330
        %v788 = vpop.f32.mrf.mxu0
        %v789 = vadd.f32 %v539, %v788
        %v790 = vpop.f32.mrf.mxu0
        %v791 = vadd.f32 %v543, %v790
        %792 = vmatprep.mubr.f32.mxu0 %v333
        %793 = vmatmul.mubr.f32.gmra.mxu0 %v332
        %v794 = vpop.f32.mrf.mxu0
        %v795 = vadd.f32 %v539, %v794
        %v796 = vpop.f32.mrf.mxu0
        %v797 = vadd.f32 %v543, %v796
        %798 = vmatprep.mubr.f32.mxu0 %v335
        %799 = vmatmul.mubr.f32.gmra.mxu0 %v334
        %v800 = vpop.f32.mrf.mxu0
        %v801 = vadd.f32 %v539, %v800
        %v802 = vpop.f32.mrf.mxu0
        %v803 = vadd.f32 %v543, %v802
        %804 = vmatprep.mubr.f32.mxu0 %v337
        %805 = vmatmul.mubr.f32.gmra.mxu0 %v336
        %v806 = vpop.f32.mrf.mxu0
        %v807 = vadd.f32 %v539, %v806
        %v808 = vpop.f32.mrf.mxu0
        %v809 = vadd.f32 %v543, %v808
        %810 = vmatprep.mubr.f32.mxu0 %v339
        %811 = vmatmul.mubr.f32.gmra.mxu0 %v338
        %v812 = vpop.f32.mrf.mxu0
        %v813 = vadd.f32 %v539, %v812
        %v814 = vpop.f32.mrf.mxu0
        %v815 = vadd.f32 %v543, %v814
        %816 = vmatprep.mubr.f32.mxu0 %v341
        %817 = vmatmul.mubr.f32.gmra.mxu0 %v340
        %v818 = vpop.f32.mrf.mxu0
        %v819 = vadd.f32 %v539, %v818
        %v820 = vpop.f32.mrf.mxu0
        %v821 = vadd.f32 %v543, %v820
        %822 = vdwg.mxu0
        %823 = vmatprep.subr.mxu0 %v435
        %824 = vmatpush1.msra.mxu0 %v434
        %825 = vmatprep.subr.mxu0 %v429
        %826 = vmatpush1.msra.mxu0 %v428
        %827 = vmatprep.subr.mxu0 %v423
        %828 = vmatpush1.msra.mxu0 %v422
        %829 = vmatprep.subr.mxu0 %v417
        %830 = vmatpush1.msra.mxu0 %v416
        %831 = vmatprep.subr.mxu0 %v411
        %832 = vmatpush1.msra.mxu0 %v410
        %833 = vmatprep.subr.mxu0 %v405
        %834 = vmatpush1.msra.mxu0 %v404
        %835 = vmatprep.subr.mxu0 %v399
        %836 = vmatpush1.msra.mxu0 %v398
        %837 = vmatprep.subr.mxu0 %v393
        %838 = vmatpush1.msra.mxu0 %v392
        %839 = vmatprep.subr.mxu0 %v387
        %840 = vmatpush1.msra.mxu0 %v386
        %841 = vmatprep.subr.mxu0 %v381
        %842 = vmatpush1.msra.mxu0 %v380
        %843 = vmatprep.subr.mxu0 %v375
        %844 = vmatpush1.msra.mxu0 %v374
        %845 = vmatprep.subr.mxu0 %v369
        %846 = vmatpush1.msra.mxu0 %v368
        %847 = vmatprep.subr.mxu0 %v363
        %848 = vmatpush1.msra.mxu0 %v362
        %849 = vmatprep.subr.mxu0 %v357
        %850 = vmatpush1.msra.mxu0 %v356
        %851 = vmatprep.subr.mxu0 %v351
        %852 = vmatpush1.msra.mxu0 %v350
        %853 = vmatprep.subr.mxu0 %v345
        %854 = vmatpush1.msra.mxu0 %v344
        %855 = vmatprep.subr.mxu0 %v531
        %856 = vmatpush2.msra.mxu0 %v530
        %857 = vmatprep.subr.mxu0 %v525
        %858 = vmatpush2.msra.mxu0 %v524
        %859 = vmatprep.subr.mxu0 %v519
        %860 = vmatpush2.msra.mxu0 %v518
        %861 = vmatprep.subr.mxu0 %v513
        %862 = vmatpush2.msra.mxu0 %v512
        %863 = vmatprep.subr.mxu0 %v507
        %864 = vmatpush2.msra.mxu0 %v506
        %865 = vmatprep.subr.mxu0 %v501
        %866 = vmatpush2.msra.mxu0 %v500
        %867 = vmatprep.subr.mxu0 %v495
        %868 = vmatpush2.msra.mxu0 %v494
        %869 = vmatprep.subr.mxu0 %v489
        %870 = vmatpush2.msra.mxu0 %v488
        %871 = vmatprep.subr.mxu0 %v483
        %872 = vmatpush2.msra.mxu0 %v482
        %873 = vmatprep.subr.mxu0 %v477
        %874 = vmatpush2.msra.mxu0 %v476
        %875 = vmatprep.subr.mxu0 %v471
        %876 = vmatpush2.msra.mxu0 %v470
        %877 = vmatprep.subr.mxu0 %v465
        %878 = vmatpush2.msra.mxu0 %v464
        %879 = vmatprep.subr.mxu0 %v459
        %880 = vmatpush2.msra.mxu0 %v458
        %881 = vmatprep.subr.mxu0 %v453
        %882 = vmatpush2.msra.mxu0 %v452
        %883 = vmatprep.subr.mxu0 %v447
        %884 = vmatpush2.msra.mxu0 %v446
        %885 = vmatprep.subr.mxu0 %v441
        %886 = vmatpush2.msra.mxu0 %v440
        %887 = vmatprep.mubr.f32.mxu0 %v279
        %888 = vmatmul.mubr.f32.gmra.mxu0 %v278
        %v889 = vpop.f32.mrf.mxu0
        %v890 = vadd.f32 %v547, %v889
        %v891 = vpop.f32.mrf.mxu0
        %v892 = vadd.f32 %v551, %v891
        %893 = vmatprep.mubr.f32.mxu0 %v281
        %894 = vmatmul.mubr.f32.gmra.mxu0 %v280
        %v895 = vpop.f32.mrf.mxu0
        %v896 = vadd.f32 %v547, %v895
        %v897 = vpop.f32.mrf.mxu0
        %v898 = vadd.f32 %v551, %v897
        %899 = vmatprep.mubr.f32.mxu0 %v283
        %900 = vmatmul.mubr.f32.gmra.mxu0 %v282
        %v901 = vpop.f32.mrf.mxu0
        %v902 = vadd.f32 %v547, %v901
        %v903 = vpop.f32.mrf.mxu0
        %v904 = vadd.f32 %v551, %v903
        %905 = vmatprep.mubr.f32.mxu0 %v285
        %906 = vmatmul.mubr.f32.gmra.mxu0 %v284
        %v907 = vpop.f32.mrf.mxu0
        %v908 = vadd.f32 %v547, %v907
        %v909 = vpop.f32.mrf.mxu0
        %v910 = vadd.f32 %v551, %v909
        %911 = vmatprep.mubr.f32.mxu0 %v287
        %912 = vmatmul.mubr.f32.gmra.mxu0 %v286
        %v913 = vpop.f32.mrf.mxu0
        %v914 = vadd.f32 %v547, %v913
        %v915 = vpop.f32.mrf.mxu0
        %v916 = vadd.f32 %v551, %v915
        %917 = vmatprep.mubr.f32.mxu0 %v289
        %918 = vmatmul.mubr.f32.gmra.mxu0 %v288
        %v919 = vpop.f32.mrf.mxu0
        %v920 = vadd.f32 %v547, %v919
        %v921 = vpop.f32.mrf.mxu0
        %v922 = vadd.f32 %v551, %v921
        %923 = vmatprep.mubr.f32.mxu0 %v291
        %924 = vmatmul.mubr.f32.gmra.mxu0 %v290
        %v925 = vpop.f32.mrf.mxu0
        %v926 = vadd.f32 %v547, %v925
        %v927 = vpop.f32.mrf.mxu0
        %v928 = vadd.f32 %v551, %v927
        %929 = vmatprep.mubr.f32.mxu0 %v293
        %930 = vmatmul.mubr.f32.gmra.mxu0 %v292
        %v931 = vpop.f32.mrf.mxu0
        %v932 = vadd.f32 %v547, %v931
        %v933 = vpop.f32.mrf.mxu0
        %v934 = vadd.f32 %v551, %v933
        %935 = vmatprep.mubr.f32.mxu0 %v295
        %936 = vmatmul.mubr.f32.gmra.mxu0 %v294
        %v937 = vpop.f32.mrf.mxu0
        %v938 = vadd.f32 %v547, %v937
        %v939 = vpop.f32.mrf.mxu0
        %v940 = vadd.f32 %v551, %v939
        %941 = vmatprep.mubr.f32.mxu0 %v297
        %942 = vmatmul.mubr.f32.gmra.mxu0 %v296
        %v943 = vpop.f32.mrf.mxu0
        %v944 = vadd.f32 %v547, %v943
        %v945 = vpop.f32.mrf.mxu0
        %v946 = vadd.f32 %v551, %v945
        %947 = vmatprep.mubr.f32.mxu0 %v299
        %948 = vmatmul.mubr.f32.gmra.mxu0 %v298
        %v949 = vpop.f32.mrf.mxu0
        %v950 = vadd.f32 %v547, %v949
        %v951 = vpop.f32.mrf.mxu0
        %v952 = vadd.f32 %v551, %v951
        %953 = vmatprep.mubr.f32.mxu0 %v301
        %954 = vmatmul.mubr.f32.gmra.mxu0 %v300
        %v955 = vpop.f32.mrf.mxu0
        %v956 = vadd.f32 %v547, %v955
        %v957 = vpop.f32.mrf.mxu0
        %v958 = vadd.f32 %v551, %v957
        %959 = vmatprep.mubr.f32.mxu0 %v303
        %960 = vmatmul.mubr.f32.gmra.mxu0 %v302
        %v961 = vpop.f32.mrf.mxu0
        %v962 = vadd.f32 %v547, %v961
        %v963 = vpop.f32.mrf.mxu0
        %v964 = vadd.f32 %v551, %v963
        %965 = vmatprep.mubr.f32.mxu0 %v305
        %966 = vmatmul.mubr.f32.gmra.mxu0 %v304
        %v967 = vpop.f32.mrf.mxu0
        %v968 = vadd.f32 %v547, %v967
        %v969 = vpop.f32.mrf.mxu0
        %v970 = vadd.f32 %v551, %v969
        %971 = vmatprep.mubr.f32.mxu0 %v307
        %972 = vmatmul.mubr.f32.gmra.mxu0 %v306
        %v973 = vpop.f32.mrf.mxu0
        %v974 = vadd.f32 %v547, %v973
        %v975 = vpop.f32.mrf.mxu0
        %v976 = vadd.f32 %v551, %v975
        %977 = vmatprep.mubr.f32.mxu0 %v309
        %978 = vmatmul.mubr.f32.gmra.mxu0 %v308
        %v979 = vpop.f32.mrf.mxu0
        %v980 = vadd.f32 %v547, %v979
        %v981 = vpop.f32.mrf.mxu0
        %v982 = vadd.f32 %v551, %v981
        %983 = vmatprep.mubr.f32.mxu0 %v311
        %984 = vmatmul.mubr.f32.gmra.mxu0 %v310
        %v985 = vpop.f32.mrf.mxu0
        %v986 = vadd.f32 %v547, %v985
        %v987 = vpop.f32.mrf.mxu0
        %v988 = vadd.f32 %v551, %v987
        %989 = vmatprep.mubr.f32.mxu0 %v313
        %990 = vmatmul.mubr.f32.gmra.mxu0 %v312
        %v991 = vpop.f32.mrf.mxu0
        %v992 = vadd.f32 %v547, %v991
        %v993 = vpop.f32.mrf.mxu0
        %v994 = vadd.f32 %v551, %v993
        %995 = vmatprep.mubr.f32.mxu0 %v315
        %996 = vmatmul.mubr.f32.gmra.mxu0 %v314
        %v997 = vpop.f32.mrf.mxu0
        %v998 = vadd.f32 %v547, %v997
        %v999 = vpop.f32.mrf.mxu0
        %v1000 = vadd.f32 %v551, %v999
        %1001 = vmatprep.mubr.f32.mxu0 %v317
        %1002 = vmatmul.mubr.f32.gmra.mxu0 %v316
        %v1003 = vpop.f32.mrf.mxu0
        %v1004 = vadd.f32 %v547, %v1003
        %v1005 = vpop.f32.mrf.mxu0
        %v1006 = vadd.f32 %v551, %v1005
        %1007 = vmatprep.mubr.f32.mxu0 %v319
        %1008 = vmatmul.mubr.f32.gmra.mxu0 %v318
        %v1009 = vpop.f32.mrf.mxu0
        %v1010 = vadd.f32 %v547, %v1009
        %v1011 = vpop.f32.mrf.mxu0
        %v1012 = vadd.f32 %v551, %v1011
        %1013 = vmatprep.mubr.f32.mxu0 %v321
        %1014 = vmatmul.mubr.f32.gmra.mxu0 %v320
        %v1015 = vpop.f32.mrf.mxu0
        %v1016 = vadd.f32 %v547, %v1015
        %v1017 = vpop.f32.mrf.mxu0
        %v1018 = vadd.f32 %v551, %v1017
        %1019 = vmatprep.mubr.f32.mxu0 %v323
        %1020 = vmatmul.mubr.f32.gmra.mxu0 %v322
        %v1021 = vpop.f32.mrf.mxu0
        %v1022 = vadd.f32 %v547, %v1021
        %v1023 = vpop.f32.mrf.mxu0
        %v1024 = vadd.f32 %v551, %v1023
        %1025 = vmatprep.mubr.f32.mxu0 %v325
        %1026 = vmatmul.mubr.f32.gmra.mxu0 %v324
        %v1027 = vpop.f32.mrf.mxu0
        %v1028 = vadd.f32 %v547, %v1027
        %v1029 = vpop.f32.mrf.mxu0
        %v1030 = vadd.f32 %v551, %v1029
        %1031 = vmatprep.mubr.f32.mxu0 %v327
        %1032 = vmatmul.mubr.f32.gmra.mxu0 %v326
        %v1033 = vpop.f32.mrf.mxu0
        %v1034 = vadd.f32 %v547, %v1033
        %v1035 = vpop.f32.mrf.mxu0
        %v1036 = vadd.f32 %v551, %v1035
        %1037 = vmatprep.mubr.f32.mxu0 %v329
        %1038 = vmatmul.mubr.f32.gmra.mxu0 %v328
        %v1039 = vpop.f32.mrf.mxu0
        %v1040 = vadd.f32 %v547, %v1039
        %v1041 = vpop.f32.mrf.mxu0
        %v1042 = vadd.f32 %v551, %v1041
        %1043 = vmatprep.mubr.f32.mxu0 %v331
        %1044 = vmatmul.mubr.f32.gmra.mxu0 %v330
        %v1045 = vpop.f32.mrf.mxu0
        %v1046 = vadd.f32 %v547, %v1045
        %v1047 = vpop.f32.mrf.mxu0
        %v1048 = vadd.f32 %v551, %v1047
        %1049 = vmatprep.mubr.f32.mxu0 %v333
        %1050 = vmatmul.mubr.f32.gmra.mxu0 %v332
        %v1051 = vpop.f32.mrf.mxu0
        %v1052 = vadd.f32 %v547, %v1051
        %v1053 = vpop.f32.mrf.mxu0
        %v1054 = vadd.f32 %v551, %v1053
        %1055 = vmatprep.mubr.f32.mxu0 %v335
        %1056 = vmatmul.mubr.f32.gmra.mxu0 %v334
        %v1057 = vpop.f32.mrf.mxu0
        %v1058 = vadd.f32 %v547, %v1057
        %v1059 = vpop.f32.mrf.mxu0
        %v1060 = vadd.f32 %v551, %v1059
        %1061 = vmatprep.mubr.f32.mxu0 %v337
        %1062 = vmatmul.mubr.f32.gmra.mxu0 %v336
        %v1063 = vpop.f32.mrf.mxu0
        %v1064 = vadd.f32 %v547, %v1063
        %v1065 = vpop.f32.mrf.mxu0
        %v1066 = vadd.f32 %v551, %v1065
        %1067 = vmatprep.mubr.f32.mxu0 %v339
        %1068 = vmatmul.mubr.f32.gmra.mxu0 %v338
        %v1069 = vpop.f32.mrf.mxu0
        %v1070 = vadd.f32 %v547, %v1069
        %v1071 = vpop.f32.mrf.mxu0
        %v1072 = vadd.f32 %v551, %v1071
        %1073 = vmatprep.mubr.f32.mxu0 %v341
        %1074 = vmatmul.mubr.f32.gmra.mxu0 %v340
        %v1075 = vpop.f32.mrf.mxu0
        %v1076 = vadd.f32 %v547, %v1075
        %v1077 = vpop.f32.mrf.mxu0
        %v1078 = vadd.f32 %v551, %v1077
        %1079 = vdwg.mxu0
        %1080 = vmatprep.subr.mxu0 %v437
        %1081 = vmatpush1.msra.mxu0 %v436
        %1082 = vmatprep.subr.mxu0 %v431
        %1083 = vmatpush1.msra.mxu0 %v430
        %1084 = vmatprep.subr.mxu0 %v425
        %1085 = vmatpush1.msra.mxu0 %v424
        %1086 = vmatprep.subr.mxu0 %v419
        %1087 = vmatpush1.msra.mxu0 %v418
        %1088 = vmatprep.subr.mxu0 %v413
        %1089 = vmatpush1.msra.mxu0 %v412
        %1090 = vmatprep.subr.mxu0 %v407
        %1091 = vmatpush1.msra.mxu0 %v406
        %1092 = vmatprep.subr.mxu0 %v401
        %1093 = vmatpush1.msra.mxu0 %v400
        %1094 = vmatprep.subr.mxu0 %v395
        %1095 = vmatpush1.msra.mxu0 %v394
        %1096 = vmatprep.subr.mxu0 %v389
        %1097 = vmatpush1.msra.mxu0 %v388
        %1098 = vmatprep.subr.mxu0 %v383
        %1099 = vmatpush1.msra.mxu0 %v382
        %1100 = vmatprep.subr.mxu0 %v377
        %1101 = vmatpush1.msra.mxu0 %v376
        %1102 = vmatprep.subr.mxu0 %v371
        %1103 = vmatpush1.msra.mxu0 %v370
        %1104 = vmatprep.subr.mxu0 %v365
        %1105 = vmatpush1.msra.mxu0 %v364
        %1106 = vmatprep.subr.mxu0 %v359
        %1107 = vmatpush1.msra.mxu0 %v358
        %1108 = vmatprep.subr.mxu0 %v353
        %1109 = vmatpush1.msra.mxu0 %v352
        %1110 = vmatprep.subr.mxu0 %v347
        %1111 = vmatpush1.msra.mxu0 %v346
        %1112 = vmatprep.subr.mxu0 %v533
        %1113 = vmatpush2.msra.mxu0 %v532
        %1114 = vmatprep.subr.mxu0 %v527
        %1115 = vmatpush2.msra.mxu0 %v526
        %1116 = vmatprep.subr.mxu0 %v521
        %1117 = vmatpush2.msra.mxu0 %v520
        %1118 = vmatprep.subr.mxu0 %v515
        %1119 = vmatpush2.msra.mxu0 %v514
        %1120 = vmatprep.subr.mxu0 %v509
        %1121 = vmatpush2.msra.mxu0 %v508
        %1122 = vmatprep.subr.mxu0 %v503
        %1123 = vmatpush2.msra.mxu0 %v502
        %1124 = vmatprep.subr.mxu0 %v497
        %1125 = vmatpush2.msra.mxu0 %v496
        %1126 = vmatprep.subr.mxu0 %v491
        %1127 = vmatpush2.msra.mxu0 %v490
        %1128 = vmatprep.subr.mxu0 %v485
        %1129 = vmatpush2.msra.mxu0 %v484
        %1130 = vmatprep.subr.mxu0 %v479
        %1131 = vmatpush2.msra.mxu0 %v478
        %1132 = vmatprep.subr.mxu0 %v473
        %1133 = vmatpush2.msra.mxu0 %v472
        %1134 = vmatprep.subr.mxu0 %v467
        %1135 = vmatpush2.msra.mxu0 %v466
        %1136 = vmatprep.subr.mxu0 %v461
        %1137 = vmatpush2.msra.mxu0 %v460
        %1138 = vmatprep.subr.mxu0 %v455
        %1139 = vmatpush2.msra.mxu0 %v454
        %1140 = vmatprep.subr.mxu0 %v449
        %1141 = vmatpush2.msra.mxu0 %v448
        %1142 = vmatprep.subr.mxu0 %v443
        %1143 = vmatpush2.msra.mxu0 %v442
        %1144 = vmatprep.mubr.f32.mxu0 %v279
        %1145 = vmatmul.mubr.f32.gmra.mxu0 %v278
        %v1146 = vpop.f32.mrf.mxu0
        %v1147 = vadd.f32 %v555, %v1146
        %v1148 = vpop.f32.mrf.mxu0
        %v1149 = vadd.f32 %v559, %v1148
        %1150 = vmatprep.mubr.f32.mxu0 %v281
        %1151 = vmatmul.mubr.f32.gmra.mxu0 %v280
        %v1152 = vpop.f32.mrf.mxu0
        %v1153 = vadd.f32 %v555, %v1152
        %v1154 = vpop.f32.mrf.mxu0
        %v1155 = vadd.f32 %v559, %v1154
        %1156 = vmatprep.mubr.f32.mxu0 %v283
        %1157 = vmatmul.mubr.f32.gmra.mxu0 %v282
        %v1158 = vpop.f32.mrf.mxu0
        %v1159 = vadd.f32 %v555, %v1158
        %v1160 = vpop.f32.mrf.mxu0
        %v1161 = vadd.f32 %v559, %v1160
        %1162 = vmatprep.mubr.f32.mxu0 %v285
        %1163 = vmatmul.mubr.f32.gmra.mxu0 %v284
        %v1164 = vpop.f32.mrf.mxu0
        %v1165 = vadd.f32 %v555, %v1164
        %v1166 = vpop.f32.mrf.mxu0
        %v1167 = vadd.f32 %v559, %v1166
        %1168 = vmatprep.mubr.f32.mxu0 %v287
        %1169 = vmatmul.mubr.f32.gmra.mxu0 %v286
        %v1170 = vpop.f32.mrf.mxu0
        %v1171 = vadd.f32 %v555, %v1170
        %v1172 = vpop.f32.mrf.mxu0
        %v1173 = vadd.f32 %v559, %v1172
        %1174 = vmatprep.mubr.f32.mxu0 %v289
        %1175 = vmatmul.mubr.f32.gmra.mxu0 %v288
        %v1176 = vpop.f32.mrf.mxu0
        %v1177 = vadd.f32 %v555, %v1176
        %v1178 = vpop.f32.mrf.mxu0
        %v1179 = vadd.f32 %v559, %v1178
        %1180 = vmatprep.mubr.f32.mxu0 %v291
        %1181 = vmatmul.mubr.f32.gmra.mxu0 %v290
        %v1182 = vpop.f32.mrf.mxu0
        %v1183 = vadd.f32 %v555, %v1182
        %v1184 = vpop.f32.mrf.mxu0
        %v1185 = vadd.f32 %v559, %v1184
        %1186 = vmatprep.mubr.f32.mxu0 %v293
        %1187 = vmatmul.mubr.f32.gmra.mxu0 %v292
        %v1188 = vpop.f32.mrf.mxu0
        %v1189 = vadd.f32 %v555, %v1188
        %v1190 = vpop.f32.mrf.mxu0
        %v1191 = vadd.f32 %v559, %v1190
        %1192 = vmatprep.mubr.f32.mxu0 %v295
        %1193 = vmatmul.mubr.f32.gmra.mxu0 %v294
        %v1194 = vpop.f32.mrf.mxu0
        %v1195 = vadd.f32 %v555, %v1194
        %v1196 = vpop.f32.mrf.mxu0
        %v1197 = vadd.f32 %v559, %v1196
        %1198 = vmatprep.mubr.f32.mxu0 %v297
        %1199 = vmatmul.mubr.f32.gmra.mxu0 %v296
        %v1200 = vpop.f32.mrf.mxu0
        %v1201 = vadd.f32 %v555, %v1200
        %v1202 = vpop.f32.mrf.mxu0
        %v1203 = vadd.f32 %v559, %v1202
        %1204 = vmatprep.mubr.f32.mxu0 %v299
        %1205 = vmatmul.mubr.f32.gmra.mxu0 %v298
        %v1206 = vpop.f32.mrf.mxu0
        %v1207 = vadd.f32 %v555, %v1206
        %v1208 = vpop.f32.mrf.mxu0
        %v1209 = vadd.f32 %v559, %v1208
        %1210 = vmatprep.mubr.f32.mxu0 %v301
        %1211 = vmatmul.mubr.f32.gmra.mxu0 %v300
        %v1212 = vpop.f32.mrf.mxu0
        %v1213 = vadd.f32 %v555, %v1212
        %v1214 = vpop.f32.mrf.mxu0
        %v1215 = vadd.f32 %v559, %v1214
        %1216 = vmatprep.mubr.f32.mxu0 %v303
        %1217 = vmatmul.mubr.f32.gmra.mxu0 %v302
        %v1218 = vpop.f32.mrf.mxu0
        %v1219 = vadd.f32 %v555, %v1218
        %v1220 = vpop.f32.mrf.mxu0
        %v1221 = vadd.f32 %v559, %v1220
        %1222 = vmatprep.mubr.f32.mxu0 %v305
        %1223 = vmatmul.mubr.f32.gmra.mxu0 %v304
        %v1224 = vpop.f32.mrf.mxu0
        %v1225 = vadd.f32 %v555, %v1224
        %v1226 = vpop.f32.mrf.mxu0
        %v1227 = vadd.f32 %v559, %v1226
        %1228 = vmatprep.mubr.f32.mxu0 %v307
        %1229 = vmatmul.mubr.f32.gmra.mxu0 %v306
        %v1230 = vpop.f32.mrf.mxu0
        %v1231 = vadd.f32 %v555, %v1230
        %v1232 = vpop.f32.mrf.mxu0
        %v1233 = vadd.f32 %v559, %v1232
        %1234 = vmatprep.mubr.f32.mxu0 %v309
        %1235 = vmatmul.mubr.f32.gmra.mxu0 %v308
        %v1236 = vpop.f32.mrf.mxu0
        %v1237 = vadd.f32 %v555, %v1236
        %v1238 = vpop.f32.mrf.mxu0
        %v1239 = vadd.f32 %v559, %v1238
        %1240 = vmatprep.mubr.f32.mxu0 %v311
        %1241 = vmatmul.mubr.f32.gmra.mxu0 %v310
        %v1242 = vpop.f32.mrf.mxu0
        %v1243 = vadd.f32 %v555, %v1242
        %v1244 = vpop.f32.mrf.mxu0
        %v1245 = vadd.f32 %v559, %v1244
        %1246 = vmatprep.mubr.f32.mxu0 %v313
        %1247 = vmatmul.mubr.f32.gmra.mxu0 %v312
        %v1248 = vpop.f32.mrf.mxu0
        %v1249 = vadd.f32 %v555, %v1248
        %v1250 = vpop.f32.mrf.mxu0
        %v1251 = vadd.f32 %v559, %v1250
        %1252 = vmatprep.mubr.f32.mxu0 %v315
        %1253 = vmatmul.mubr.f32.gmra.mxu0 %v314
        %v1254 = vpop.f32.mrf.mxu0
        %v1255 = vadd.f32 %v555, %v1254
        %v1256 = vpop.f32.mrf.mxu0
        %v1257 = vadd.f32 %v559, %v1256
        %1258 = vmatprep.mubr.f32.mxu0 %v317
        %1259 = vmatmul.mubr.f32.gmra.mxu0 %v316
        %v1260 = vpop.f32.mrf.mxu0
        %v1261 = vadd.f32 %v555, %v1260
        %v1262 = vpop.f32.mrf.mxu0
        %v1263 = vadd.f32 %v559, %v1262
        %1264 = vmatprep.mubr.f32.mxu0 %v319
        %1265 = vmatmul.mubr.f32.gmra.mxu0 %v318
        %v1266 = vpop.f32.mrf.mxu0
        %v1267 = vadd.f32 %v555, %v1266
        %v1268 = vpop.f32.mrf.mxu0
        %v1269 = vadd.f32 %v559, %v1268
        %1270 = vmatprep.mubr.f32.mxu0 %v321
        %1271 = vmatmul.mubr.f32.gmra.mxu0 %v320
        %v1272 = vpop.f32.mrf.mxu0
        %v1273 = vadd.f32 %v555, %v1272
        %v1274 = vpop.f32.mrf.mxu0
        %v1275 = vadd.f32 %v559, %v1274
        %1276 = vmatprep.mubr.f32.mxu0 %v323
        %1277 = vmatmul.mubr.f32.gmra.mxu0 %v322
        %v1278 = vpop.f32.mrf.mxu0
        %v1279 = vadd.f32 %v555, %v1278
        %v1280 = vpop.f32.mrf.mxu0
        %v1281 = vadd.f32 %v559, %v1280
        %1282 = vmatprep.mubr.f32.mxu0 %v325
        %1283 = vmatmul.mubr.f32.gmra.mxu0 %v324
        %v1284 = vpop.f32.mrf.mxu0
        %v1285 = vadd.f32 %v555, %v1284
        %v1286 = vpop.f32.mrf.mxu0
        %v1287 = vadd.f32 %v559, %v1286
        %1288 = vmatprep.mubr.f32.mxu0 %v327
        %1289 = vmatmul.mubr.f32.gmra.mxu0 %v326
        %v1290 = vpop.f32.mrf.mxu0
        %v1291 = vadd.f32 %v555, %v1290
        %v1292 = vpop.f32.mrf.mxu0
        %v1293 = vadd.f32 %v559, %v1292
        %1294 = vmatprep.mubr.f32.mxu0 %v329
        %1295 = vmatmul.mubr.f32.gmra.mxu0 %v328
        %v1296 = vpop.f32.mrf.mxu0
        %v1297 = vadd.f32 %v555, %v1296
        %v1298 = vpop.f32.mrf.mxu0
        %v1299 = vadd.f32 %v559, %v1298
        %1300 = vmatprep.mubr.f32.mxu0 %v331
        %1301 = vmatmul.mubr.f32.gmra.mxu0 %v330
        %v1302 = vpop.f32.mrf.mxu0
        %v1303 = vadd.f32 %v555, %v1302
        %v1304 = vpop.f32.mrf.mxu0
        %v1305 = vadd.f32 %v559, %v1304
        %1306 = vmatprep.mubr.f32.mxu0 %v333
        %1307 = vmatmul.mubr.f32.gmra.mxu0 %v332
        %v1308 = vpop.f32.mrf.mxu0
        %v1309 = vadd.f32 %v555, %v1308
        %v1310 = vpop.f32.mrf.mxu0
        %v1311 = vadd.f32 %v559, %v1310
        %1312 = vmatprep.mubr.f32.mxu0 %v335
        %1313 = vmatmul.mubr.f32.gmra.mxu0 %v334
        %v1314 = vpop.f32.mrf.mxu0
        %v1315 = vadd.f32 %v555, %v1314
        %v1316 = vpop.f32.mrf.mxu0
        %v1317 = vadd.f32 %v559, %v1316
        %1318 = vmatprep.mubr.f32.mxu0 %v337
        %1319 = vmatmul.mubr.f32.gmra.mxu0 %v336
        %v1320 = vpop.f32.mrf.mxu0
        %v1321 = vadd.f32 %v555, %v1320
        %v1322 = vpop.f32.mrf.mxu0
        %v1323 = vadd.f32 %v559, %v1322
        %1324 = vmatprep.mubr.f32.mxu0 %v339
        %1325 = vmatmul.mubr.f32.gmra.mxu0 %v338
        %v1326 = vpop.f32.mrf.mxu0
        %v1327 = vadd.f32 %v555, %v1326
        %v1328 = vpop.f32.mrf.mxu0
        %v1329 = vadd.f32 %v559, %v1328
        %1330 = vmatprep.mubr.f32.mxu0 %v341
        %1331 = vmatmul.mubr.f32.gmra.mxu0 %v340
        %v1332 = vpop.f32.mrf.mxu0
        %v1333 = vadd.f32 %v555, %v1332
        %v1334 = vpop.f32.mrf.mxu0
        %v1335 = vadd.f32 %v559, %v1334
        %1336 = vdwg.mxu0
        %1337 = vst [vmem:[%s267] sm:$0xff] %v633
        %1338 = vst [vmem:[%s267 + $0x8] sm:$0xff] %v635
        %1339 = vst [vmem:[%s267 + $0x10] sm:$0xff] %v639
        %1340 = vst [vmem:[%s267 + $0x18] sm:$0xff] %v641
        %1341 = vst [vmem:[%s267 + $0x20] sm:$0xff] %v645
        %1342 = vst [vmem:[%s267 + $0x28] sm:$0xff] %v647
        %1343 = vst [vmem:[%s267 + $0x30] sm:$0xff] %v651
        %1344 = vst [vmem:[%s267 + $0x38] sm:$0xff] %v653
        %1345 = vst [vmem:[%s267 + $0x40] sm:$0xff] %v657
        %1346 = vst [vmem:[%s267 + $0x48] sm:$0xff] %v659
        %1347 = vst [vmem:[%s267 + $0x50] sm:$0xff] %v663
        %1348 = vst [vmem:[%s267 + $0x58] sm:$0xff] %v665
        %1349 = vst [vmem:[%s267 + $0x60] sm:$0xff] %v669
        %1350 = vst [vmem:[%s267 + $0x68] sm:$0xff] %v671
        %1351 = vst [vmem:[%s267 + $0x70] sm:$0xff] %v675
        %1352 = vst [vmem:[%s267 + $0x78] sm:$0xff] %v677
        %1353 = vst [vmem:[%s267 + $0x80] sm:$0xff] %v681
        %1354 = vst [vmem:[%s267 + $0x88] sm:$0xff] %v683
        %1355 = vst [vmem:[%s267 + $0x90] sm:$0xff] %v687
        %1356 = vst [vmem:[%s267 + $0x98] sm:$0xff] %v689
        %1357 = vst [vmem:[%s267 + $0xa0] sm:$0xff] %v693
        %1358 = vst [vmem:[%s267 + $0xa8] sm:$0xff] %v695
        %1359 = vst [vmem:[%s267 + $0xb0] sm:$0xff] %v699
        %1360 = vst [vmem:[%s267 + $0xb8] sm:$0xff] %v701
        %1361 = vst [vmem:[%s267 + $0xc0] sm:$0xff] %v705
        %1362 = vst [vmem:[%s267 + $0xc8] sm:$0xff] %v707
        %1363 = vst [vmem:[%s267 + $0xd0] sm:$0xff] %v711
        %1364 = vst [vmem:[%s267 + $0xd8] sm:$0xff] %v713
        %1365 = vst [vmem:[%s267 + $0xe0] sm:$0xff] %v717
        %1366 = vst [vmem:[%s267 + $0xe8] sm:$0xff] %v719
        %1367 = vst [vmem:[%s267 + $0xf0] sm:$0xff] %v723
        %1368 = vst [vmem:[%s267 + $0xf8] sm:$0xff] %v725
        %1369 = vst [vmem:[%s267 + $0x100] sm:$0xff] %v729
        %1370 = vst [vmem:[%s267 + $0x108] sm:$0xff] %v731
        %1371 = vst [vmem:[%s267 + $0x110] sm:$0xff] %v735
        %1372 = vst [vmem:[%s267 + $0x118] sm:$0xff] %v737
        %1373 = vst [vmem:[%s267 + $0x120] sm:$0xff] %v741
        %1374 = vst [vmem:[%s267 + $0x128] sm:$0xff] %v743
        %1375 = vst [vmem:[%s267 + $0x130] sm:$0xff] %v747
        %1376 = vst [vmem:[%s267 + $0x138] sm:$0xff] %v749
        %1377 = vst [vmem:[%s267 + $0x140] sm:$0xff] %v753
        %1378 = vst [vmem:[%s267 + $0x148] sm:$0xff] %v755
        %1379 = vst [vmem:[%s267 + $0x150] sm:$0xff] %v759
        %1380 = vst [vmem:[%s267 + $0x158] sm:$0xff] %v761
        %1381 = vst [vmem:[%s267 + $0x160] sm:$0xff] %v765
        %1382 = vst [vmem:[%s267 + $0x168] sm:$0xff] %v767
        %1383 = vst [vmem:[%s267 + $0x170] sm:$0xff] %v771
        %1384 = vst [vmem:[%s267 + $0x178] sm:$0xff] %v773
        %1385 = vst [vmem:[%s267 + $0x180] sm:$0xff] %v777
        %1386 = vst [vmem:[%s267 + $0x188] sm:$0xff] %v779
        %1387 = vst [vmem:[%s267 + $0x190] sm:$0xff] %v783
        %1388 = vst [vmem:[%s267 + $0x198] sm:$0xff] %v785
        %1389 = vst [vmem:[%s267 + $0x1a0] sm:$0xff] %v789
        %1390 = vst [vmem:[%s267 + $0x1a8] sm:$0xff] %v791
        %1391 = vst [vmem:[%s267 + $0x1b0] sm:$0xff] %v795
        %1392 = vst [vmem:[%s267 + $0x1b8] sm:$0xff] %v797
        %1393 = vst [vmem:[%s267 + $0x1c0] sm:$0xff] %v801
        %1394 = vst [vmem:[%s267 + $0x1c8] sm:$0xff] %v803
        %1395 = vst [vmem:[%s267 + $0x1d0] sm:$0xff] %v807
        %1396 = vst [vmem:[%s267 + $0x1d8] sm:$0xff] %v809
        %1397 = vst [vmem:[%s267 + $0x1e0] sm:$0xff] %v813
        %1398 = vst [vmem:[%s267 + $0x1e8] sm:$0xff] %v815
        %1399 = vst [vmem:[%s267 + $0x1f0] sm:$0xff] %v819
        %1400 = vst [vmem:[%s267 + $0x1f8] sm:$0xff] %v821
        %1401 = vst [vmem:[%s274] sm:$0xff] %v890
        %1402 = vst [vmem:[%s274 + $0x8] sm:$0xff] %v892
        %1403 = vst [vmem:[%s274 + $0x10] sm:$0xff] %v1147
        %1404 = vst [vmem:[%s274 + $0x18] sm:$0xff] %v1149
        %1405 = vst [vmem:[%s274 + $0x20] sm:$0xff] %v896
        %1406 = vst [vmem:[%s274 + $0x28] sm:$0xff] %v898
        %1407 = vst [vmem:[%s274 + $0x30] sm:$0xff] %v1153
        %1408 = vst [vmem:[%s274 + $0x38] sm:$0xff] %v1155
        %1409 = vst [vmem:[%s274 + $0x40] sm:$0xff] %v902
        %1410 = vst [vmem:[%s274 + $0x48] sm:$0xff] %v904
        %1411 = vst [vmem:[%s274 + $0x50] sm:$0xff] %v1159
        %1412 = vst [vmem:[%s274 + $0x58] sm:$0xff] %v1161
        %1413 = vst [vmem:[%s274 + $0x60] sm:$0xff] %v908
        %1414 = vst [vmem:[%s274 + $0x68] sm:$0xff] %v910
        %1415 = vst [vmem:[%s274 + $0x70] sm:$0xff] %v1165
        %1416 = vst [vmem:[%s274 + $0x78] sm:$0xff] %v1167
        %1417 = vst [vmem:[%s274 + $0x80] sm:$0xff] %v914
        %1418 = vst [vmem:[%s274 + $0x88] sm:$0xff] %v916
        %1419 = vst [vmem:[%s274 + $0x90] sm:$0xff] %v1171
        %1420 = vst [vmem:[%s274 + $0x98] sm:$0xff] %v1173
        %1421 = vst [vmem:[%s274 + $0xa0] sm:$0xff] %v920
        %1422 = vst [vmem:[%s274 + $0xa8] sm:$0xff] %v922
        %1423 = vst [vmem:[%s274 + $0xb0] sm:$0xff] %v1177
        %1424 = vst [vmem:[%s274 + $0xb8] sm:$0xff] %v1179
        %1425 = vst [vmem:[%s274 + $0xc0] sm:$0xff] %v926
        %1426 = vst [vmem:[%s274 + $0xc8] sm:$0xff] %v928
        %1427 = vst [vmem:[%s274 + $0xd0] sm:$0xff] %v1183
        %1428 = vst [vmem:[%s274 + $0xd8] sm:$0xff] %v1185
        %1429 = vst [vmem:[%s274 + $0xe0] sm:$0xff] %v932
        %1430 = vst [vmem:[%s274 + $0xe8] sm:$0xff] %v934
        %1431 = vst [vmem:[%s274 + $0xf0] sm:$0xff] %v1189
        %1432 = vst [vmem:[%s274 + $0xf8] sm:$0xff] %v1191
        %1433 = vst [vmem:[%s274 + $0x100] sm:$0xff] %v938
        %1434 = vst [vmem:[%s274 + $0x108] sm:$0xff] %v940
        %1435 = vst [vmem:[%s274 + $0x110] sm:$0xff] %v1195
        %1436 = vst [vmem:[%s274 + $0x118] sm:$0xff] %v1197
        %1437 = vst [vmem:[%s274 + $0x120] sm:$0xff] %v944
        %1438 = vst [vmem:[%s274 + $0x128] sm:$0xff] %v946
        %1439 = vst [vmem:[%s274 + $0x130] sm:$0xff] %v1201
        %1440 = vst [vmem:[%s274 + $0x138] sm:$0xff] %v1203
        %1441 = vst [vmem:[%s274 + $0x140] sm:$0xff] %v950
        %1442 = vst [vmem:[%s274 + $0x148] sm:$0xff] %v952
        %1443 = vst [vmem:[%s274 + $0x150] sm:$0xff] %v1207
        %1444 = vst [vmem:[%s274 + $0x158] sm:$0xff] %v1209
        %1445 = vst [vmem:[%s274 + $0x160] sm:$0xff] %v956
        %1446 = vst [vmem:[%s274 + $0x168] sm:$0xff] %v958
        %1447 = vst [vmem:[%s274 + $0x170] sm:$0xff] %v1213
        %1448 = vst [vmem:[%s274 + $0x178] sm:$0xff] %v1215
        %1449 = vst [vmem:[%s274 + $0x180] sm:$0xff] %v962
        %1450 = vst [vmem:[%s274 + $0x188] sm:$0xff] %v964
        %1451 = vst [vmem:[%s274 + $0x190] sm:$0xff] %v1219
        %1452 = vst [vmem:[%s274 + $0x198] sm:$0xff] %v1221
        %1453 = vst [vmem:[%s274 + $0x1a0] sm:$0xff] %v968
        %1454 = vst [vmem:[%s274 + $0x1a8] sm:$0xff] %v970
        %1455 = vst [vmem:[%s274 + $0x1b0] sm:$0xff] %v1225
        %1456 = vst [vmem:[%s274 + $0x1b8] sm:$0xff] %v1227
        %1457 = vst [vmem:[%s274 + $0x1c0] sm:$0xff] %v974
        %1458 = vst [vmem:[%s274 + $0x1c8] sm:$0xff] %v976
        %1459 = vst [vmem:[%s274 + $0x1d0] sm:$0xff] %v1231
        %1460 = vst [vmem:[%s274 + $0x1d8] sm:$0xff] %v1233
        %1461 = vst [vmem:[%s274 + $0x1e0] sm:$0xff] %v980
        %1462 = vst [vmem:[%s274 + $0x1e8] sm:$0xff] %v982
        %1463 = vst [vmem:[%s274 + $0x1f0] sm:$0xff] %v1237
        %1464 = vst [vmem:[%s274 + $0x1f8] sm:$0xff] %v1239
        %1465 = vst [vmem:[%s274 + $0x200] sm:$0xff] %v986
        %1466 = vst [vmem:[%s274 + $0x208] sm:$0xff] %v988
        %1467 = vst [vmem:[%s274 + $0x210] sm:$0xff] %v1243
        %1468 = vst [vmem:[%s274 + $0x218] sm:$0xff] %v1245
        %1469 = vst [vmem:[%s274 + $0x220] sm:$0xff] %v992
        %1470 = vst [vmem:[%s274 + $0x228] sm:$0xff] %v994
        %1471 = vst [vmem:[%s274 + $0x230] sm:$0xff] %v1249
        %1472 = vst [vmem:[%s274 + $0x238] sm:$0xff] %v1251
        %1473 = vst [vmem:[%s274 + $0x240] sm:$0xff] %v998
        %1474 = vst [vmem:[%s274 + $0x248] sm:$0xff] %v1000
        %1475 = vst [vmem:[%s274 + $0x250] sm:$0xff] %v1255
        %1476 = vst [vmem:[%s274 + $0x258] sm:$0xff] %v1257
        %1477 = vst [vmem:[%s274 + $0x260] sm:$0xff] %v1004
        %1478 = vst [vmem:[%s274 + $0x268] sm:$0xff] %v1006
        %1479 = vst [vmem:[%s274 + $0x270] sm:$0xff] %v1261
        %1480 = vst [vmem:[%s274 + $0x278] sm:$0xff] %v1263
        %1481 = vst [vmem:[%s274 + $0x280] sm:$0xff] %v1010
        %1482 = vst [vmem:[%s274 + $0x288] sm:$0xff] %v1012
        %1483 = vst [vmem:[%s274 + $0x290] sm:$0xff] %v1267
        %1484 = vst [vmem:[%s274 + $0x298] sm:$0xff] %v1269
        %1485 = vst [vmem:[%s274 + $0x2a0] sm:$0xff] %v1016
        %1486 = vst [vmem:[%s274 + $0x2a8] sm:$0xff] %v1018
        %1487 = vst [vmem:[%s274 + $0x2b0] sm:$0xff] %v1273
        %1488 = vst [vmem:[%s274 + $0x2b8] sm:$0xff] %v1275
        %1489 = vst [vmem:[%s274 + $0x2c0] sm:$0xff] %v1022
        %1490 = vst [vmem:[%s274 + $0x2c8] sm:$0xff] %v1024
        %1491 = vst [vmem:[%s274 + $0x2d0] sm:$0xff] %v1279
        %1492 = vst [vmem:[%s274 + $0x2d8] sm:$0xff] %v1281
        %1493 = vst [vmem:[%s274 + $0x2e0] sm:$0xff] %v1028
        %1494 = vst [vmem:[%s274 + $0x2e8] sm:$0xff] %v1030
        %1495 = vst [vmem:[%s274 + $0x2f0] sm:$0xff] %v1285
        %1496 = vst [vmem:[%s274 + $0x2f8] sm:$0xff] %v1287
        %1497 = vst [vmem:[%s274 + $0x300] sm:$0xff] %v1034
        %1498 = vst [vmem:[%s274 + $0x308] sm:$0xff] %v1036
        %1499 = vst [vmem:[%s274 + $0x310] sm:$0xff] %v1291
        %1500 = vst [vmem:[%s274 + $0x318] sm:$0xff] %v1293
        %1501 = vst [vmem:[%s274 + $0x320] sm:$0xff] %v1040
        %1502 = vst [vmem:[%s274 + $0x328] sm:$0xff] %v1042
        %1503 = vst [vmem:[%s274 + $0x330] sm:$0xff] %v1297
        %1504 = vst [vmem:[%s274 + $0x338] sm:$0xff] %v1299
        %1505 = vst [vmem:[%s274 + $0x340] sm:$0xff] %v1046
        %1506 = vst [vmem:[%s274 + $0x348] sm:$0xff] %v1048
        %1507 = vst [vmem:[%s274 + $0x350] sm:$0xff] %v1303
        %1508 = vst [vmem:[%s274 + $0x358] sm:$0xff] %v1305
        %1509 = vst [vmem:[%s274 + $0x360] sm:$0xff] %v1052
        %1510 = vst [vmem:[%s274 + $0x368] sm:$0xff] %v1054
        %1511 = vst [vmem:[%s274 + $0x370] sm:$0xff] %v1309
        %1512 = vst [vmem:[%s274 + $0x378] sm:$0xff] %v1311
        %1513 = vst [vmem:[%s274 + $0x380] sm:$0xff] %v1058
        %1514 = vst [vmem:[%s274 + $0x388] sm:$0xff] %v1060
        %1515 = vst [vmem:[%s274 + $0x390] sm:$0xff] %v1315
        %1516 = vst [vmem:[%s274 + $0x398] sm:$0xff] %v1317
        %1517 = vst [vmem:[%s274 + $0x3a0] sm:$0xff] %v1064
        %1518 = vst [vmem:[%s274 + $0x3a8] sm:$0xff] %v1066
        %1519 = vst [vmem:[%s274 + $0x3b0] sm:$0xff] %v1321
        %1520 = vst [vmem:[%s274 + $0x3b8] sm:$0xff] %v1323
        %1521 = vst [vmem:[%s274 + $0x3c0] sm:$0xff] %v1070
        %1522 = vst [vmem:[%s274 + $0x3c8] sm:$0xff] %v1072
        %1523 = vst [vmem:[%s274 + $0x3d0] sm:$0xff] %v1327
        %1524 = vst [vmem:[%s274 + $0x3d8] sm:$0xff] %v1329
        %1525 = vst [vmem:[%s274 + $0x3e0] sm:$0xff] %v1076
        %1526 = vst [vmem:[%s274 + $0x3e8] sm:$0xff] %v1078
        %1527 = vst [vmem:[%s274 + $0x3f0] sm:$0xff] %v1333
        %1528 = vst [vmem:[%s274 + $0x3f8] sm:$0xff] %v1335
        %s1529 = sand.u32 %s118, 1
        %s1530 = scalar_lea.sflag [#allocation4], %s1529
        %s1531 = sand.u32 %s118, 1
        %s1532 = smul.addr %s1531, 512
        %s1533 = scalar_lea.vmem [#allocation8], %s1532
        %s1534 = sand.u32 %s146, 1
        %s1535 = scalar_lea.sflag [#allocation10], %s1534
        %s1536 = sand.u32 %s146, 1
        %s1537 = smul.addr %s1536, 1024
        %s1538 = scalar_lea.vmem [#allocation9], %s1537
        // Predicated region
        $region45: #{tpu_custom_call.1} parent=31 // pred_check
          %p1539 = pneg %p128
        $region46: #{tpu_custom_call.1} parent=31 // pred_check_branch
          %1541 = sbr.rel (%p1539) target = $region48
        $region47: #{tpu_custom_call.1} parent=31 // pred_region
          %s1542 = smul.u32 32, %s31
          %s1544 = ssub.s32 8192, 8192
          %1545 = vsyncadd %s1530, %s1544
          %s1546 = smul.addr %s1542, 2
          %s1547 = smul.addr %s30, 128
          %s1548 = sadd.s32 %s1546, %s1547
          %s1549 = smul.addr %s1548, 128
          %s1550 = scalar_lea.hbm %s3, %s1549
          %s1551 = sshll.u32 %s1533, 4
          %s1552 = int_to_ptr.vmem [resolvable:$true] %s1551
          %1557 = dma.vmem_to_hbm [thread:$0]  %s1552, 8192, %s1550, %s1530, 256, 256, 16
        $region48: #{tpu_custom_call.1} parent=31 // pred_fallthru
          _
        // Predicated region
        $region49: #{tpu_custom_call.1} parent=31 // pred_check
          %p1558 = pneg %p156
        $region50: #{tpu_custom_call.1} parent=31 // pred_check_branch
          %1560 = sbr.rel (%p1558) target = $region52
        $region51: #{tpu_custom_call.1} parent=31 // pred_region
          %s1561 = smul.u32 32, %s31
          %s1563 = ssub.s32 16384, 16384
          %1564 = vsyncadd %s1535, %s1563
          %s1565 = smul.addr %s1561, 4
          %s1566 = smul.addr %s30, 256
          %s1567 = sadd.s32 %s1565, %s1566
          %s1568 = smul.addr %s1567, 128
          %s1569 = scalar_lea.hbm %s4, %s1568
          %s1570 = sshll.u32 %s1538, 4
          %s1571 = int_to_ptr.vmem [resolvable:$true] %s1570
          %1576 = dma.vmem_to_hbm [thread:$0]  %s1571, 16384, %s1569, %s1535, 512, 512, 32
        $region52: #{tpu_custom_call.1} parent=31 // pred_fallthru
          _
      $region32: #{tpu_custom_call.1} parent=5 // pred_fallthru
        _
      %p1577 = scmp.le.s32.totalorder 2, %s21
      // Predicated region
      $region53: #{tpu_custom_call.1} parent=5 // pred_check
        %p1578 = pneg %p1577
      $region54: #{tpu_custom_call.1} parent=5 // pred_check_branch
        %1580 = sbr.rel (%p1578) target = $region56
      $region55: #{tpu_custom_call.1} parent=5 // pred_region
        %s1581 = ssub.s32 %s21, 2
        // Predicated region
        $region57: #{tpu_custom_call.1} parent=55 // pred_check
          %p1582 = pneg %p134
        $region58: #{tpu_custom_call.1} parent=55 // pred_check_branch
          %1584 = sbr.rel (%p1582) target = $region60
        $region59: #{tpu_custom_call.1} parent=55 // pred_region
          %s1585 = sand.u32 %s119, 1
          %s1586 = scalar_lea.sflag [#allocation4], %s1585
          %s1587 = sand.u32 %s119, 1
          %s1588 = smul.addr %s1587, 512
          %s1589 = scalar_lea.vmem [#allocation8], %s1588
          %1590 = dma.done %s1586, 8192
        $region60: #{tpu_custom_call.1} parent=55 // pred_fallthru
          _
        // Predicated region
        $region61: #{tpu_custom_call.1} parent=55 // pred_check
          %p1591 = pneg %p162
        $region62: #{tpu_custom_call.1} parent=55 // pred_check_branch
          %1593 = sbr.rel (%p1591) target = $region64
        $region63: #{tpu_custom_call.1} parent=55 // pred_region
          %s1594 = sand.u32 %s147, 1
          %s1595 = scalar_lea.sflag [#allocation10], %s1594
          %s1596 = sand.u32 %s147, 1
          %s1597 = smul.addr %s1596, 1024
          %s1598 = scalar_lea.vmem [#allocation9], %s1597
          %1599 = dma.done %s1595, 16384
        $region64: #{tpu_custom_call.1} parent=55 // pred_fallthru
          _
      $region56: #{tpu_custom_call.1} parent=5 // pred_fallthru
        _
    $region6: #{tpu_custom_call.1} parent=1 // loop_footer
      %s25 = sadd.s32 1, %s21
    $region7: #{tpu_custom_call.1} parent=1 // loop_footer_branch
      %20 = sbr.rel target = $region3
    $region8: #{tpu_custom_call.1} parent=1 // loop_exit
      _
    %1600 = vsyncpa [#allocation3], 1
    %s1601 = scalar_lea.sflag [#allocation3], 1
    %1602 = vsyncpa %s1601, 1
    %1603 = vsyncpa [#allocation6], 1
    %1604 = vsyncpa [#allocation4], 1
    %s1605 = scalar_lea.sflag [#allocation4], 1
    %1606 = vsyncpa %s1605, 1
    %1607 = vsyncpa [#allocation10], 1
    %s1608 = scalar_lea.sflag [#allocation10], 1
    %1609 = vsyncpa %s1608, 1

</llo_original>
